<compile_context>
chip_gen: v7x
topology: tpu7x:2x2x1
jax: 0.10.0
libtpu: 0.0.40
codegen_flags: <defaults>
</compile_context>

<pallas_src>
import functools
import math

import jax
import jax.numpy as jnp
from jax.experimental import pallas as pl
from jax.experimental.pallas import tpu as pltpu


# ---------------------------------------------------------------------------
# Fused bottleneck kernel (built per static config)
# ---------------------------------------------------------------------------
def _make_bottleneck_kernel(*, s, H, W, Cin, planes, Cout, has_downsample, is_last):
    Hs, Ws = H // s, W // s      # per-phase interior spatial size
    Ho, Wo = Hs, Ws              # conv2 output spatial size (3x3, pad=1, stride=s)

    def off(p):                  # interior offset inside a padded phase scratch
        return 1 if p == 0 else 0

    n_in = 7 + (2 if has_downsample else 0)
    n_out = 2 if is_last else 1

    def kernel(*refs):
        assert len(refs) == n_in + n_out + s * s
        it = iter(refs)
        x_ref = next(it)                         # (1, s*s, Hs*Ws, Cin) bf16
        w1_ref, b1_ref = next(it), next(it)      # (Cin, planes) bf16, (1, planes) f32
        w2_ref, b2_ref = next(it), next(it)      # (9, planes, planes) bf16, (1, planes) f32
        w3_ref, b3_ref = next(it), next(it)      # (planes, Cout) bf16, (1, Cout) f32
        if has_downsample:
            wd_ref, bd_ref = next(it), next(it)  # (Cin, Cout) bf16, (1, Cout) f32
        out_ref = next(it)                       # (1, Ho*Wo, Cout) f32
        pre_ref = next(it) if is_last else None
        act = [next(it) for _ in range(s * s)]   # f32 VMEM phase scratches, [p*s + q]

        # ---- conv1 (1x1) + bn1 + relu -> zero-padded, stride-phase-split VMEM ----
        # Phase p along H holds padded rows hp with hp % s == p (hp = h + 1); same along W.
        for p in range(s):
            for q in range(s):
                scr = act[p * s + q]
                scr[...] = jnp.zeros(scr.shape, scr.dtype)
                xp = x_ref[0, ((p - 1) % s) * s + ((q - 1) % s)]     # (Hs*Ws, Cin) bf16
                a1 = jnp.dot(xp, w1_ref[...], preferred_element_type=jnp.float32)
                a1 = jnp.maximum(a1 + b1_ref[...], 0.0)
                scr[off(p):off(p) + Hs, off(q):off(q) + Ws, :] = a1.reshape(Hs, Ws, planes)

        # ---- conv2 (3x3, stride s, pad 1) + bn2 + relu: 9 shifted MXU matmuls ----
        acc2 = None
        for kh in range(3):
            for kw in range(3):
                scr = act[(kh % s) * s + (kw % s)]
                sl = scr[kh // s:kh // s + Ho, kw // s:kw // s + Wo, :]
                lhs = sl.reshape(Ho * Wo, planes).astype(jnp.bfloat16)
                part = jnp.dot(lhs, w2_ref[3 * kh + kw],
                               preferred_element_type=jnp.float32)
                acc2 = part if acc2 is None else acc2 + part
        a2 = jnp.maximum(acc2 + b2_ref[...], 0.0).astype(jnp.bfloat16)   # (Ho*Wo, planes)

        # ---- shortcut: 1x1 stride-s conv (+ bn) of x, or identity ----
        xr = x_ref[0, 0]                          # phase (0,0) == x[:, ::s, ::s, :]
        if has_downsample:
            res = jnp.dot(xr, wd_ref[...], preferred_element_type=jnp.float32) + bd_ref[...]
        else:
            res = xr.astype(jnp.float32)

        # ---- conv3 (1x1) + bn3 + residual add (+ relu) ----
        pre = (jnp.dot(a2, w3_ref[...], preferred_element_type=jnp.float32)
               + b3_ref[...] + res)
        if is_last:
            pre_ref[0] = pre.astype(pre_ref.dtype)
        out_ref[0] = jnp.maximum(pre, 0.0).astype(out_ref.dtype)

    return kernel


# ---------------------------------------------------------------------------
# Wrapper
# ---------------------------------------------------------------------------
def _full_spec(a):
    nd = a.ndim
    return pl.BlockSpec(a.shape, lambda n, nd=nd: (0,) * nd)


def bottleneck_forward(x_nchw, params, *, stride, has_downsample, is_last):
    """Fused Bottleneck forward. x: (N, Cin, H, W) f32 -> NCHW output(s) (f32)."""
    N, Cin, H, W = x_nchw.shape
    s = int(stride)
    assert H % s == 0 and W % s == 0, "spatial dims must be divisible by stride"
    Hs, Ws = H // s, W // s
    Ho, Wo = Hs, Ws
    planes = params["w1"].shape[1]
    Cout = params["w3"].shape[1]
    if not has_downsample:
        assert s == 1 and Cin == Cout, "identity shortcut needs stride=1, Cin==4*planes"

    # NCHW -> NHWC -> stride-phase split (r = h % s, q = w % s) -> per-phase flatten, bf16.
    x_nhwc = jnp.transpose(x_nchw, (0, 2, 3, 1))
    x_ph = x_nhwc.reshape(N, Hs, s, Ws, s, Cin)
    x_ph = jnp.transpose(x_ph, (0, 2, 4, 1, 3, 5))                 # (N, s, s, Hs, Ws, Cin)
    x_ph = x_ph.reshape(N, s * s, Hs * Ws, Cin).astype(jnp.bfloat16)

    # Padded-phase scratch extents along one spatial axis (top pad lands in phase 0,
    # bottom pad in phase (dim+1) % s).
    def nrows(dim, p):
        return dim // s + (1 if p == 0 else 0) + (1 if (dim + 1) % s == p else 0)

    scratch_shapes = [pltpu.VMEM((nrows(H, p), nrows(W, q), planes), jnp.float32)
                      for p in range(s) for q in range(s)]

    kernel = _make_bottleneck_kernel(s=s, H=H, W=W, Cin=Cin, planes=planes, Cout=Cout,
                                     has_downsample=has_downsample, is_last=is_last)

    names = ("w1", "b1", "w2", "b2", "w3", "b3") + (("wd", "bd") if has_downsample else ())
    inputs = [x_ph] + [params[k] for k in names]
    in_specs = [pl.BlockSpec((1, s * s, Hs * Ws, Cin), lambda n: (n, 0, 0, 0))]
    in_specs += [_full_spec(params[k]) for k in names]

    out_spec = pl.BlockSpec((1, Ho * Wo, Cout), lambda n: (n, 0, 0))
    out_sds = jax.ShapeDtypeStruct((N, Ho * Wo, Cout), jnp.float32)
    out_shape = (out_sds, out_sds) if is_last else out_sds
    out_specs = (out_spec, out_spec) if is_last else out_spec

    res = pl.pallas_call(
        kernel,
        grid=(N,),
        in_specs=in_specs,
        out_specs=out_specs,
        out_shape=out_shape,
        scratch_shapes=scratch_shapes,
        compiler_params=pltpu.CompilerParams(dimension_semantics=("parallel",)),
    )(*inputs)

    def to_nchw(y):
        return jnp.transpose(y.reshape(N, Ho, Wo, Cout), (0, 3, 1, 2))

    if is_last:
        return to_nchw(res[0]), to_nchw(res[1])
    return to_nchw(res)


# ---------------------------------------------------------------------------
# Host-side parameter prep: BN folding, layout, bf16 cast
# ---------------------------------------------------------------------------
def _fold_bn(gamma, beta, mean, var, eps=1e-5):
    scale = gamma / jnp.sqrt(var + eps)
    return scale, beta - mean * scale


def prepare_params(tw, has_downsample=True):
    s1, b1 = _fold_bn(*tw["bn1"])
    s2, b2 = _fold_bn(*tw["bn2"])
    s3, b3 = _fold_bn(*tw["bn3"])
    w1 = tw["conv1"][:, :, 0, 0].T * s1[None, :]                           # (Cin, planes)
    w2 = jnp.transpose(tw["conv2"], (2, 3, 1, 0)) * s2[None, None, None, :]
    w2 = w2.reshape(9, tw["conv2"].shape[1], tw["conv2"].shape[0])         # (9, ci, co)
    w3 = tw["conv3"][:, :, 0, 0].T * s3[None, :]                           # (planes, 4*planes)
    p = {
        "w1": w1.astype(jnp.bfloat16), "b1": b1.reshape(1, -1).astype(jnp.float32),
        "w2": w2.astype(jnp.bfloat16), "b2": b2.reshape(1, -1).astype(jnp.float32),
        "w3": w3.astype(jnp.bfloat16), "b3": b3.reshape(1, -1).astype(jnp.float32),
    }
    if has_downsample:
        sd, bd = _fold_bn(*tw["down_bn"])
        wd = tw["down"][:, :, 0, 0].T * sd[None, :]                        # (Cin, 4*planes)
        p["wd"] = wd.astype(jnp.bfloat16)
        p["bd"] = bd.reshape(1, -1).astype(jnp.float32)
    return p


# ---------------------------------------------------------------------------
# Pure-JAX f32 reference (correctness check)
# ---------------------------------------------------------------------------
def ref_forward(x, tw, stride):
    def conv(x, w, s=1, p=0):
        return jax.lax.conv_general_dilated(
            x, w, (s, s), [(p, p), (p, p)],
            dimension_numbers=("NCHW", "OIHW", "NCHW"))

    def bn(x, stats, eps=1e-5):
        g, b, m, v = [t.reshape(1, -1, 1, 1) for t in stats]
        return (x - m) / jnp.sqrt(v + eps) * g + b

    out = jax.nn.relu(bn(conv(x, tw["conv1"]), tw["bn1"]))
    out = jax.nn.relu(bn(conv(out, tw["conv2"], stride, 1), tw["bn2"]))
    out = bn(conv(out, tw["conv3"]), tw["bn3"])
    res = bn(conv(x, tw["down"], stride), tw["down_bn"])
    preact = out + res
    return jax.nn.relu(preact), preact


# ---------------------------------------------------------------------------
if __name__ == "__main__":
    key = jax.random.PRNGKey(0)
    batch, inplanes, H, W = 2, 16, 16, 16
    planes, stride, expansion = 8, 2, 4
    keys = jax.random.split(key, 12)

    def conv_init(k, cout, cin, kh, kw):
        fan = cin * kh * kw
        return jax.random.normal(k, (cout, cin, kh, kw), jnp.float32) * math.sqrt(2.0 / fan)

    def bn_init(k, c):
        k1, k2, k3, k4 = jax.random.split(k, 4)
        gamma = jax.random.uniform(k1, (c,), jnp.float32, 0.5, 1.5)
        beta = jax.random.normal(k2, (c,), jnp.float32) * 0.1
        mean = jax.random.normal(k3, (c,), jnp.float32) * 0.1
        var = jax.random.uniform(k4, (c,), jnp.float32, 0.5, 1.5)
        return gamma, beta, mean, var

    # Torch-layout weights (OIHW) + BN running stats.
    tw = {
        "conv1": conv_init(keys[0], planes, inplanes, 1, 1),
        "bn1": bn_init(keys[1], planes),
        "conv2": conv_init(keys[2], planes, planes, 3, 3),
        "bn2": bn_init(keys[3], planes),
        "conv3": conv_init(keys[4], planes * expansion, planes, 1, 1),
        "bn3": bn_init(keys[5], planes * expansion),
        "down": conv_init(keys[6], planes * expansion, inplanes, 1, 1),
        "down_bn": bn_init(keys[7], planes * expansion),
    }
    params = prepare_params(tw, has_downsample=True)

    x = jax.random.normal(keys[8], (batch, inplanes, H, W), jnp.float32)

    fwd = jax.jit(functools.partial(bottleneck_forward, stride=stride,
                                    has_downsample=True, is_last=True))
    out, preact = fwd(x, params)
    out = jax.block_until_ready(out)
    preact = jax.block_until_ready(preact)

    ref_out, ref_pre = ref_forward(x, tw, stride)
    assert out.shape == ref_out.shape and preact.shape == ref_pre.shape
    # bf16 MXU path vs f32 reference -> modestly relaxed tolerance.
    assert jnp.allclose(out, ref_out, atol=1e-1, rtol=1e-1)
    assert jnp.allclose(preact, ref_pre, atol=1e-1, rtol=1e-1)

    print("KERNEL_OK")
</pallas_src>

<mosaic_0001>
module attributes {stable_mosaic.version = 11 : i64} {
  func.func @kernel(%arg0: i32, %arg1: memref<1x4x64x16xbf16, #tpu.memory_space<vmem>>, %arg2: memref<16x8xbf16, #tpu.memory_space<vmem>>, %arg3: memref<1x8xf32, #tpu.memory_space<vmem>>, %arg4: memref<9x8x8xbf16, #tpu.memory_space<vmem>>, %arg5: memref<1x8xf32, #tpu.memory_space<vmem>>, %arg6: memref<8x32xbf16, #tpu.memory_space<vmem>>, %arg7: memref<1x32xf32, #tpu.memory_space<vmem>>, %arg8: memref<16x32xbf16, #tpu.memory_space<vmem>>, %arg9: memref<1x32xf32, #tpu.memory_space<vmem>>, %arg10: memref<1x64x32xf32, #tpu.memory_space<vmem>>, %arg11: memref<1x64x32xf32, #tpu.memory_space<vmem>>, %arg12: memref<9x9x8xf32, #tpu.memory_space<vmem>>, %arg13: memref<9x9x8xf32, #tpu.memory_space<vmem>>, %arg14: memref<9x9x8xf32, #tpu.memory_space<vmem>>, %arg15: memref<9x9x8xf32, #tpu.memory_space<vmem>>) attributes {dimension_semantics = [#tpu.dimension_semantics<parallel>], iteration_bounds = array<i64: 2>, scalar_prefetch = 0 : i64, scratch_operands = 4 : i64, tpu.core_type = #tpu.core_type<tc>, window_params = [{transform_indices = @transform_0, window_bounds = array<i64: 1, 4, 64, 16>}, {pipeline_mode = #tpu.pipeline_mode<synchronous>, transform_indices = @transform_1, window_bounds = array<i64: 16, 8>}, {pipeline_mode = #tpu.pipeline_mode<synchronous>, transform_indices = @transform_2, window_bounds = array<i64: 1, 8>}, {pipeline_mode = #tpu.pipeline_mode<synchronous>, transform_indices = @transform_3, window_bounds = array<i64: 9, 8, 8>}, {pipeline_mode = #tpu.pipeline_mode<synchronous>, transform_indices = @transform_4, window_bounds = array<i64: 1, 8>}, {pipeline_mode = #tpu.pipeline_mode<synchronous>, transform_indices = @transform_5, window_bounds = array<i64: 8, 32>}, {pipeline_mode = #tpu.pipeline_mode<synchronous>, transform_indices = @transform_6, window_bounds = array<i64: 1, 32>}, {pipeline_mode = #tpu.pipeline_mode<synchronous>, transform_indices = @transform_7, window_bounds = array<i64: 16, 32>}, {pipeline_mode = #tpu.pipeline_mode<synchronous>, transform_indices = @transform_8, window_bounds = array<i64: 1, 32>}, {transform_indices = @transform_9, window_bounds = array<i64: 1, 64, 32>}, {transform_indices = @transform_10, window_bounds = array<i64: 1, 64, 32>}]} {
    %cst = arith.constant 0.000000e+00 : f32
    %0 = vector.broadcast %cst : f32 to vector<9x9x8xf32>
    %c0 = arith.constant 0 : index
    %c0_0 = arith.constant 0 : index
    %c0_1 = arith.constant 0 : index
    %1 = vector.load %arg12[%c0, %c0_0, %c0_1] : memref<9x9x8xf32, #tpu.memory_space<vmem>>, vector<9x9x8xf32>
    tpu.vector_store %arg12[%c0, %c0_0, %c0_1], %0 {strides = array<i32>} : memref<9x9x8xf32, #tpu.memory_space<vmem>>, vector<9x9x8xf32>,
    %c0_2 = arith.constant 0 : index
    %c3 = arith.constant 3 : index
    %c0_3 = arith.constant 0 : index
    %c0_4 = arith.constant 0 : index
    %2 = vector.load %arg1[%c0_2, %c3, %c0_3, %c0_4] : memref<1x4x64x16xbf16, #tpu.memory_space<vmem>>, vector<1x1x64x16xbf16>
    %3 = vector.shape_cast %2 : vector<1x1x64x16xbf16> to vector<64x16xbf16>
    %c0_5 = arith.constant 0 : index
    %c0_6 = arith.constant 0 : index
    %4 = vector.load %arg2[%c0_5, %c0_6] : memref<16x8xbf16, #tpu.memory_space<vmem>>, vector<16x8xbf16>
    %cst_7 = arith.constant dense<0.000000e+00> : vector<64x8xf32>
    %5 = tpu.matmul %3, %4, %cst_7 {dimension_numbers = #tpu.dot_dimension_numbers<[1], [0], [0], [1], [0, 0, 1, 1], [], []>} : vector<64x16xbf16>, vector<16x8xbf16>, vector<64x8xf32> -> vector<64x8xf32>
    %c0_8 = arith.constant 0 : index
    %c0_9 = arith.constant 0 : index
    %6 = vector.load %arg3[%c0_8, %c0_9] : memref<1x8xf32, #tpu.memory_space<vmem>>, vector<1x8xf32>
    %7 = vector.broadcast %6 : vector<1x8xf32> to vector<64x8xf32>
    %8 = arith.addf %5, %7 : vector<64x8xf32>
    %cst_10 = arith.constant 0.000000e+00 : f32
    %9 = vector.broadcast %cst_10 : f32 to vector<64x8xf32>
    %10 = arith.maximumf %8, %9 : vector<64x8xf32>
    %11 = vector.shape_cast %10 : vector<64x8xf32> to vector<8x8x8xf32>
    %c1 = arith.constant 1 : index
    %c1_11 = arith.constant 1 : index
    %c0_12 = arith.constant 0 : index
    %12 = vector.load %arg12[%c1, %c1_11, %c0_12] : memref<9x9x8xf32, #tpu.memory_space<vmem>>, vector<8x8x8xf32>
    tpu.vector_store %arg12[%c1, %c1_11, %c0_12], %11 {strides = array<i32>} : memref<9x9x8xf32, #tpu.memory_space<vmem>>, vector<8x8x8xf32>,
    %cst_13 = arith.constant 0.000000e+00 : f32
    %13 = vector.broadcast %cst_13 : f32 to vector<9x9x8xf32>
    %c0_14 = arith.constant 0 : index
    %c0_15 = arith.constant 0 : index
    %c0_16 = arith.constant 0 : index
    %14 = vector.load %arg13[%c0_14, %c0_15, %c0_16] : memref<9x9x8xf32, #tpu.memory_space<vmem>>, vector<9x9x8xf32>
    tpu.vector_store %arg13[%c0_14, %c0_15, %c0_16], %13 {strides = array<i32>} : memref<9x9x8xf32, #tpu.memory_space<vmem>>, vector<9x9x8xf32>,
    %c0_17 = arith.constant 0 : index
    %c2 = arith.constant 2 : index
    %c0_18 = arith.constant 0 : index
    %c0_19 = arith.constant 0 : index
    %15 = vector.load %arg1[%c0_17, %c2, %c0_18, %c0_19] : memref<1x4x64x16xbf16, #tpu.memory_space<vmem>>, vector<1x1x64x16xbf16>
    %16 = vector.shape_cast %15 : vector<1x1x64x16xbf16> to vector<64x16xbf16>
    %c0_20 = arith.constant 0 : index
    %c0_21 = arith.constant 0 : index
    %17 = vector.load %arg2[%c0_20, %c0_21] : memref<16x8xbf16, #tpu.memory_space<vmem>>, vector<16x8xbf16>
    %cst_22 = arith.constant dense<0.000000e+00> : vector<64x8xf32>
    %18 = tpu.matmul %16, %17, %cst_22 {dimension_numbers = #tpu.dot_dimension_numbers<[1], [0], [0], [1], [0, 0, 1, 1], [], []>} : vector<64x16xbf16>, vector<16x8xbf16>, vector<64x8xf32> -> vector<64x8xf32>
    %c0_23 = arith.constant 0 : index
    %c0_24 = arith.constant 0 : index
    %19 = vector.load %arg3[%c0_23, %c0_24] : memref<1x8xf32, #tpu.memory_space<vmem>>, vector<1x8xf32>
    %20 = vector.broadcast %19 : vector<1x8xf32> to vector<64x8xf32>
    %21 = arith.addf %18, %20 : vector<64x8xf32>
    %cst_25 = arith.constant 0.000000e+00 : f32
    %22 = vector.broadcast %cst_25 : f32 to vector<64x8xf32>
    %23 = arith.maximumf %21, %22 : vector<64x8xf32>
    %24 = vector.shape_cast %23 : vector<64x8xf32> to vector<8x8x8xf32>
    %c1_26 = arith.constant 1 : index
    %c0_27 = arith.constant 0 : index
    %c0_28 = arith.constant 0 : index
    %25 = vector.load %arg13[%c1_26, %c0_27, %c0_28] : memref<9x9x8xf32, #tpu.memory_space<vmem>>, vector<8x8x8xf32>
    tpu.vector_store %arg13[%c1_26, %c0_27, %c0_28], %24 {strides = array<i32>} : memref<9x9x8xf32, #tpu.memory_space<vmem>>, vector<8x8x8xf32>,
    %cst_29 = arith.constant 0.000000e+00 : f32
    %26 = vector.broadcast %cst_29 : f32 to vector<9x9x8xf32>
    %c0_30 = arith.constant 0 : index
    %c0_31 = arith.constant 0 : index
    %c0_32 = arith.constant 0 : index
    %27 = vector.load %arg14[%c0_30, %c0_31, %c0_32] : memref<9x9x8xf32, #tpu.memory_space<vmem>>, vector<9x9x8xf32>
    tpu.vector_store %arg14[%c0_30, %c0_31, %c0_32], %26 {strides = array<i32>} : memref<9x9x8xf32, #tpu.memory_space<vmem>>, vector<9x9x8xf32>,
    %c0_33 = arith.constant 0 : index
    %c1_34 = arith.constant 1 : index
    %c0_35 = arith.constant 0 : index
    %c0_36 = arith.constant 0 : index
    %28 = vector.load %arg1[%c0_33, %c1_34, %c0_35, %c0_36] : memref<1x4x64x16xbf16, #tpu.memory_space<vmem>>, vector<1x1x64x16xbf16>
    %29 = vector.shape_cast %28 : vector<1x1x64x16xbf16> to vector<64x16xbf16>
    %c0_37 = arith.constant 0 : index
    %c0_38 = arith.constant 0 : index
    %30 = vector.load %arg2[%c0_37, %c0_38] : memref<16x8xbf16, #tpu.memory_space<vmem>>, vector<16x8xbf16>
    %cst_39 = arith.constant dense<0.000000e+00> : vector<64x8xf32>
    %31 = tpu.matmul %29, %30, %cst_39 {dimension_numbers = #tpu.dot_dimension_numbers<[1], [0], [0], [1], [0, 0, 1, 1], [], []>} : vector<64x16xbf16>, vector<16x8xbf16>, vector<64x8xf32> -> vector<64x8xf32>
    %c0_40 = arith.constant 0 : index
    %c0_41 = arith.constant 0 : index
    %32 = vector.load %arg3[%c0_40, %c0_41] : memref<1x8xf32, #tpu.memory_space<vmem>>, vector<1x8xf32>
    %33 = vector.broadcast %32 : vector<1x8xf32> to vector<64x8xf32>
    %34 = arith.addf %31, %33 : vector<64x8xf32>
    %cst_42 = arith.constant 0.000000e+00 : f32
    %35 = vector.broadcast %cst_42 : f32 to vector<64x8xf32>
    %36 = arith.maximumf %34, %35 : vector<64x8xf32>
    %37 = vector.shape_cast %36 : vector<64x8xf32> to vector<8x8x8xf32>
    %c0_43 = arith.constant 0 : index
    %c1_44 = arith.constant 1 : index
    %c0_45 = arith.constant 0 : index
    %38 = vector.load %arg14[%c0_43, %c1_44, %c0_45] : memref<9x9x8xf32, #tpu.memory_space<vmem>>, vector<8x8x8xf32>
    tpu.vector_store %arg14[%c0_43, %c1_44, %c0_45], %37 {strides = array<i32>} : memref<9x9x8xf32, #tpu.memory_space<vmem>>, vector<8x8x8xf32>,
    %cst_46 = arith.constant 0.000000e+00 : f32
    %39 = vector.broadcast %cst_46 : f32 to vector<9x9x8xf32>
    %c0_47 = arith.constant 0 : index
    %c0_48 = arith.constant 0 : index
    %c0_49 = arith.constant 0 : index
    %40 = vector.load %arg15[%c0_47, %c0_48, %c0_49] : memref<9x9x8xf32, #tpu.memory_space<vmem>>, vector<9x9x8xf32>
    tpu.vector_store %arg15[%c0_47, %c0_48, %c0_49], %39 {strides = array<i32>} : memref<9x9x8xf32, #tpu.memory_space<vmem>>, vector<9x9x8xf32>,
    %c0_50 = arith.constant 0 : index
    %c0_51 = arith.constant 0 : index
    %c0_52 = arith.constant 0 : index
    %c0_53 = arith.constant 0 : index
    %41 = vector.load %arg1[%c0_50, %c0_51, %c0_52, %c0_53] : memref<1x4x64x16xbf16, #tpu.memory_space<vmem>>, vector<1x1x64x16xbf16>
    %42 = vector.shape_cast %41 : vector<1x1x64x16xbf16> to vector<64x16xbf16>
    %c0_54 = arith.constant 0 : index
    %c0_55 = arith.constant 0 : index
    %43 = vector.load %arg2[%c0_54, %c0_55] : memref<16x8xbf16, #tpu.memory_space<vmem>>, vector<16x8xbf16>
    %cst_56 = arith.constant dense<0.000000e+00> : vector<64x8xf32>
    %44 = tpu.matmul %42, %43, %cst_56 {dimension_numbers = #tpu.dot_dimension_numbers<[1], [0], [0], [1], [0, 0, 1, 1], [], []>} : vector<64x16xbf16>, vector<16x8xbf16>, vector<64x8xf32> -> vector<64x8xf32>
    %c0_57 = arith.constant 0 : index
    %c0_58 = arith.constant 0 : index
    %45 = vector.load %arg3[%c0_57, %c0_58] : memref<1x8xf32, #tpu.memory_space<vmem>>, vector<1x8xf32>
    %46 = vector.broadcast %45 : vector<1x8xf32> to vector<64x8xf32>
    %47 = arith.addf %44, %46 : vector<64x8xf32>
    %cst_59 = arith.constant 0.000000e+00 : f32
    %48 = vector.broadcast %cst_59 : f32 to vector<64x8xf32>
    %49 = arith.maximumf %47, %48 : vector<64x8xf32>
    %50 = vector.shape_cast %49 : vector<64x8xf32> to vector<8x8x8xf32>
    %c0_60 = arith.constant 0 : index
    %c0_61 = arith.constant 0 : index
    %c0_62 = arith.constant 0 : index
    %51 = vector.load %arg15[%c0_60, %c0_61, %c0_62] : memref<9x9x8xf32, #tpu.memory_space<vmem>>, vector<8x8x8xf32>
    tpu.vector_store %arg15[%c0_60, %c0_61, %c0_62], %50 {strides = array<i32>} : memref<9x9x8xf32, #tpu.memory_space<vmem>>, vector<8x8x8xf32>,
    %c0_63 = arith.constant 0 : index
    %c0_64 = arith.constant 0 : index
    %c0_65 = arith.constant 0 : index
    %52 = vector.load %arg12[%c0_63, %c0_64, %c0_65] : memref<9x9x8xf32, #tpu.memory_space<vmem>>, vector<8x8x8xf32>
    %53 = vector.shape_cast %52 : vector<8x8x8xf32> to vector<64x8xf32>
    %54 = arith.truncf %53 : vector<64x8xf32> to vector<64x8xbf16>
    %c0_66 = arith.constant 0 : index
    %c0_67 = arith.constant 0 : index
    %c0_68 = arith.constant 0 : index
    %55 = vector.load %arg4[%c0_66, %c0_67, %c0_68] : memref<9x8x8xbf16, #tpu.memory_space<vmem>>, vector<1x8x8xbf16>
    %56 = vector.shape_cast %55 : vector<1x8x8xbf16> to vector<8x8xbf16>
    %cst_69 = arith.constant dense<0.000000e+00> : vector<64x8xf32>
    %57 = tpu.matmul %54, %56, %cst_69 {dimension_numbers = #tpu.dot_dimension_numbers<[1], [0], [0], [1], [0, 0, 1, 1], [], []>} : vector<64x8xbf16>, vector<8x8xbf16>, vector<64x8xf32> -> vector<64x8xf32>
    %c0_70 = arith.constant 0 : index
    %c0_71 = arith.constant 0 : index
    %c0_72 = arith.constant 0 : index
    %58 = vector.load %arg13[%c0_70, %c0_71, %c0_72] : memref<9x9x8xf32, #tpu.memory_space<vmem>>, vector<8x8x8xf32>
    %59 = vector.shape_cast %58 : vector<8x8x8xf32> to vector<64x8xf32>
    %60 = arith.truncf %59 : vector<64x8xf32> to vector<64x8xbf16>
    %c1_73 = arith.constant 1 : index
    %c0_74 = arith.constant 0 : index
    %c0_75 = arith.constant 0 : index
    %61 = vector.load %arg4[%c1_73, %c0_74, %c0_75] : memref<9x8x8xbf16, #tpu.memory_space<vmem>>, vector<1x8x8xbf16>
    %62 = vector.shape_cast %61 : vector<1x8x8xbf16> to vector<8x8xbf16>
    %cst_76 = arith.constant dense<0.000000e+00> : vector<64x8xf32>
    %63 = tpu.matmul %60, %62, %cst_76 {dimension_numbers = #tpu.dot_dimension_numbers<[1], [0], [0], [1], [0, 0, 1, 1], [], []>} : vector<64x8xbf16>, vector<8x8xbf16>, vector<64x8xf32> -> vector<64x8xf32>
    %64 = arith.addf %57, %63 : vector<64x8xf32>
    %c0_77 = arith.constant 0 : index
    %c1_78 = arith.constant 1 : index
    %c0_79 = arith.constant 0 : index
    %65 = vector.load %arg12[%c0_77, %c1_78, %c0_79] : memref<9x9x8xf32, #tpu.memory_space<vmem>>, vector<8x8x8xf32>
    %66 = vector.shape_cast %65 : vector<8x8x8xf32> to vector<64x8xf32>
    %67 = arith.truncf %66 : vector<64x8xf32> to vector<64x8xbf16>
    %c2_80 = arith.constant 2 : index
    %c0_81 = arith.constant 0 : index
    %c0_82 = arith.constant 0 : index
    %68 = vector.load %arg4[%c2_80, %c0_81, %c0_82] : memref<9x8x8xbf16, #tpu.memory_space<vmem>>, vector<1x8x8xbf16>
    %69 = vector.shape_cast %68 : vector<1x8x8xbf16> to vector<8x8xbf16>
    %cst_83 = arith.constant dense<0.000000e+00> : vector<64x8xf32>
    %70 = tpu.matmul %67, %69, %cst_83 {dimension_numbers = #tpu.dot_dimension_numbers<[1], [0], [0], [1], [0, 0, 1, 1], [], []>} : vector<64x8xbf16>, vector<8x8xbf16>, vector<64x8xf32> -> vector<64x8xf32>
    %71 = arith.addf %64, %70 : vector<64x8xf32>
    %c0_84 = arith.constant 0 : index
    %c0_85 = arith.constant 0 : index
    %c0_86 = arith.constant 0 : index
    %72 = vector.load %arg14[%c0_84, %c0_85, %c0_86] : memref<9x9x8xf32, #tpu.memory_space<vmem>>, vector<8x8x8xf32>
    %73 = vector.shape_cast %72 : vector<8x8x8xf32> to vector<64x8xf32>
    %74 = arith.truncf %73 : vector<64x8xf32> to vector<64x8xbf16>
    %c3_87 = arith.constant 3 : index
    %c0_88 = arith.constant 0 : index
    %c0_89 = arith.constant 0 : index
    %75 = vector.load %arg4[%c3_87, %c0_88, %c0_89] : memref<9x8x8xbf16, #tpu.memory_space<vmem>>, vector<1x8x8xbf16>
    %76 = vector.shape_cast %75 : vector<1x8x8xbf16> to vector<8x8xbf16>
    %cst_90 = arith.constant dense<0.000000e+00> : vector<64x8xf32>
    %77 = tpu.matmul %74, %76, %cst_90 {dimension_numbers = #tpu.dot_dimension_numbers<[1], [0], [0], [1], [0, 0, 1, 1], [], []>} : vector<64x8xbf16>, vector<8x8xbf16>, vector<64x8xf32> -> vector<64x8xf32>
    %78 = arith.addf %71, %77 : vector<64x8xf32>
    %c0_91 = arith.constant 0 : index
    %c0_92 = arith.constant 0 : index
    %c0_93 = arith.constant 0 : index
    %79 = vector.load %arg15[%c0_91, %c0_92, %c0_93] : memref<9x9x8xf32, #tpu.memory_space<vmem>>, vector<8x8x8xf32>
    %80 = vector.shape_cast %79 : vector<8x8x8xf32> to vector<64x8xf32>
    %81 = arith.truncf %80 : vector<64x8xf32> to vector<64x8xbf16>
    %c4 = arith.constant 4 : index
    %c0_94 = arith.constant 0 : index
    %c0_95 = arith.constant 0 : index
    %82 = vector.load %arg4[%c4, %c0_94, %c0_95] : memref<9x8x8xbf16, #tpu.memory_space<vmem>>, vector<1x8x8xbf16>
    %83 = vector.shape_cast %82 : vector<1x8x8xbf16> to vector<8x8xbf16>
    %cst_96 = arith.constant dense<0.000000e+00> : vector<64x8xf32>
    %84 = tpu.matmul %81, %83, %cst_96 {dimension_numbers = #tpu.dot_dimension_numbers<[1], [0], [0], [1], [0, 0, 1, 1], [], []>} : vector<64x8xbf16>, vector<8x8xbf16>, vector<64x8xf32> -> vector<64x8xf32>
    %85 = arith.addf %78, %84 : vector<64x8xf32>
    %c0_97 = arith.constant 0 : index
    %c1_98 = arith.constant 1 : index
    %c0_99 = arith.constant 0 : index
    %86 = vector.load %arg14[%c0_97, %c1_98, %c0_99] : memref<9x9x8xf32, #tpu.memory_space<vmem>>, vector<8x8x8xf32>
    %87 = vector.shape_cast %86 : vector<8x8x8xf32> to vector<64x8xf32>
    %88 = arith.truncf %87 : vector<64x8xf32> to vector<64x8xbf16>
    %c5 = arith.constant 5 : index
    %c0_100 = arith.constant 0 : index
    %c0_101 = arith.constant 0 : index
    %89 = vector.load %arg4[%c5, %c0_100, %c0_101] : memref<9x8x8xbf16, #tpu.memory_space<vmem>>, vector<1x8x8xbf16>
    %90 = vector.shape_cast %89 : vector<1x8x8xbf16> to vector<8x8xbf16>
    %cst_102 = arith.constant dense<0.000000e+00> : vector<64x8xf32>
    %91 = tpu.matmul %88, %90, %cst_102 {dimension_numbers = #tpu.dot_dimension_numbers<[1], [0], [0], [1], [0, 0, 1, 1], [], []>} : vector<64x8xbf16>, vector<8x8xbf16>, vector<64x8xf32> -> vector<64x8xf32>
    %92 = arith.addf %85, %91 : vector<64x8xf32>
    %c1_103 = arith.constant 1 : index
    %c0_104 = arith.constant 0 : index
    %c0_105 = arith.constant 0 : index
    %93 = vector.load %arg12[%c1_103, %c0_104, %c0_105] : memref<9x9x8xf32, #tpu.memory_space<vmem>>, vector<8x8x8xf32>
    %94 = vector.shape_cast %93 : vector<8x8x8xf32> to vector<64x8xf32>
    %95 = arith.truncf %94 : vector<64x8xf32> to vector<64x8xbf16>
    %c6 = arith.constant 6 : index
    %c0_106 = arith.constant 0 : index
    %c0_107 = arith.constant 0 : index
    %96 = vector.load %arg4[%c6, %c0_106, %c0_107] : memref<9x8x8xbf16, #tpu.memory_space<vmem>>, vector<1x8x8xbf16>
    %97 = vector.shape_cast %96 : vector<1x8x8xbf16> to vector<8x8xbf16>
    %cst_108 = arith.constant dense<0.000000e+00> : vector<64x8xf32>
    %98 = tpu.matmul %95, %97, %cst_108 {dimension_numbers = #tpu.dot_dimension_numbers<[1], [0], [0], [1], [0, 0, 1, 1], [], []>} : vector<64x8xbf16>, vector<8x8xbf16>, vector<64x8xf32> -> vector<64x8xf32>
    %99 = arith.addf %92, %98 : vector<64x8xf32>
    %c1_109 = arith.constant 1 : index
    %c0_110 = arith.constant 0 : index
    %c0_111 = arith.constant 0 : index
    %100 = vector.load %arg13[%c1_109, %c0_110, %c0_111] : memref<9x9x8xf32, #tpu.memory_space<vmem>>, vector<8x8x8xf32>
    %101 = vector.shape_cast %100 : vector<8x8x8xf32> to vector<64x8xf32>
    %102 = arith.truncf %101 : vector<64x8xf32> to vector<64x8xbf16>
    %c7 = arith.constant 7 : index
    %c0_112 = arith.constant 0 : index
    %c0_113 = arith.constant 0 : index
    %103 = vector.load %arg4[%c7, %c0_112, %c0_113] : memref<9x8x8xbf16, #tpu.memory_space<vmem>>, vector<1x8x8xbf16>
    %104 = vector.shape_cast %103 : vector<1x8x8xbf16> to vector<8x8xbf16>
    %cst_114 = arith.constant dense<0.000000e+00> : vector<64x8xf32>
    %105 = tpu.matmul %102, %104, %cst_114 {dimension_numbers = #tpu.dot_dimension_numbers<[1], [0], [0], [1], [0, 0, 1, 1], [], []>} : vector<64x8xbf16>, vector<8x8xbf16>, vector<64x8xf32> -> vector<64x8xf32>
    %106 = arith.addf %99, %105 : vector<64x8xf32>
    %c1_115 = arith.constant 1 : index
    %c1_116 = arith.constant 1 : index
    %c0_117 = arith.constant 0 : index
    %107 = vector.load %arg12[%c1_115, %c1_116, %c0_117] : memref<9x9x8xf32, #tpu.memory_space<vmem>>, vector<8x8x8xf32>
    %108 = vector.shape_cast %107 : vector<8x8x8xf32> to vector<64x8xf32>
    %109 = arith.truncf %108 : vector<64x8xf32> to vector<64x8xbf16>
    %c8 = arith.constant 8 : index
    %c0_118 = arith.constant 0 : index
    %c0_119 = arith.constant 0 : index
    %110 = vector.load %arg4[%c8, %c0_118, %c0_119] : memref<9x8x8xbf16, #tpu.memory_space<vmem>>, vector<1x8x8xbf16>
    %111 = vector.shape_cast %110 : vector<1x8x8xbf16> to vector<8x8xbf16>
    %cst_120 = arith.constant dense<0.000000e+00> : vector<64x8xf32>
    %112 = tpu.matmul %109, %111, %cst_120 {dimension_numbers = #tpu.dot_dimension_numbers<[1], [0], [0], [1], [0, 0, 1, 1], [], []>} : vector<64x8xbf16>, vector<8x8xbf16>, vector<64x8xf32> -> vector<64x8xf32>
    %113 = arith.addf %106, %112 : vector<64x8xf32>
    %c0_121 = arith.constant 0 : index
    %c0_122 = arith.constant 0 : index
    %114 = vector.load %arg5[%c0_121, %c0_122] : memref<1x8xf32, #tpu.memory_space<vmem>>, vector<1x8xf32>
    %115 = vector.broadcast %114 : vector<1x8xf32> to vector<64x8xf32>
    %116 = arith.addf %113, %115 : vector<64x8xf32>
    %cst_123 = arith.constant 0.000000e+00 : f32
    %117 = vector.broadcast %cst_123 : f32 to vector<64x8xf32>
    %118 = arith.maximumf %116, %117 : vector<64x8xf32>
    %119 = arith.truncf %118 : vector<64x8xf32> to vector<64x8xbf16>
    %c0_124 = arith.constant 0 : index
    %c0_125 = arith.constant 0 : index
    %c0_126 = arith.constant 0 : index
    %c0_127 = arith.constant 0 : index
    %120 = vector.load %arg1[%c0_124, %c0_125, %c0_126, %c0_127] : memref<1x4x64x16xbf16, #tpu.memory_space<vmem>>, vector<1x1x64x16xbf16>
    %121 = vector.shape_cast %120 : vector<1x1x64x16xbf16> to vector<64x16xbf16>
    %c0_128 = arith.constant 0 : index
    %c0_129 = arith.constant 0 : index
    %122 = vector.load %arg8[%c0_128, %c0_129] : memref<16x32xbf16, #tpu.memory_space<vmem>>, vector<16x32xbf16>
    %cst_130 = arith.constant dense<0.000000e+00> : vector<64x32xf32>
    %123 = tpu.matmul %121, %122, %cst_130 {dimension_numbers = #tpu.dot_dimension_numbers<[1], [0], [0], [1], [0, 0, 1, 1], [], []>} : vector<64x16xbf16>, vector<16x32xbf16>, vector<64x32xf32> -> vector<64x32xf32>
    %c0_131 = arith.constant 0 : index
    %c0_132 = arith.constant 0 : index
    %124 = vector.load %arg9[%c0_131, %c0_132] : memref<1x32xf32, #tpu.memory_space<vmem>>, vector<1x32xf32>
    %125 = vector.broadcast %124 : vector<1x32xf32> to vector<64x32xf32>
    %126 = arith.addf %123, %125 : vector<64x32xf32>
    %c0_133 = arith.constant 0 : index
    %c0_134 = arith.constant 0 : index
    %127 = vector.load %arg6[%c0_133, %c0_134] : memref<8x32xbf16, #tpu.memory_space<vmem>>, vector<8x32xbf16>
    %cst_135 = arith.constant dense<0.000000e+00> : vector<64x32xf32>
    %128 = tpu.matmul %119, %127, %cst_135 {dimension_numbers = #tpu.dot_dimension_numbers<[1], [0], [0], [1], [0, 0, 1, 1], [], []>} : vector<64x8xbf16>, vector<8x32xbf16>, vector<64x32xf32> -> vector<64x32xf32>
    %c0_136 = arith.constant 0 : index
    %c0_137 = arith.constant 0 : index
    %129 = vector.load %arg7[%c0_136, %c0_137] : memref<1x32xf32, #tpu.memory_space<vmem>>, vector<1x32xf32>
    %130 = vector.broadcast %129 : vector<1x32xf32> to vector<64x32xf32>
    %131 = arith.addf %128, %130 : vector<64x32xf32>
    %132 = arith.addf %131, %126 : vector<64x32xf32>
    %c0_138 = arith.constant 0 : index
    %c0_139 = arith.constant 0 : index
    %c0_140 = arith.constant 0 : index
    %133 = vector.load %arg11[%c0_138, %c0_139, %c0_140] : memref<1x64x32xf32, #tpu.memory_space<vmem>>, vector<1x64x32xf32>
    %134 = vector.shape_cast %133 : vector<1x64x32xf32> to vector<64x32xf32>
    %135 = vector.shape_cast %132 : vector<64x32xf32> to vector<1x64x32xf32>
    tpu.vector_store %arg11[%c0_138, %c0_139, %c0_140], %135 {strides = array<i32>} : memref<1x64x32xf32, #tpu.memory_space<vmem>>, vector<1x64x32xf32>,
    %cst_141 = arith.constant 0.000000e+00 : f32
    %136 = vector.broadcast %cst_141 : f32 to vector<64x32xf32>
    %137 = arith.maximumf %132, %136 : vector<64x32xf32>
    %c0_142 = arith.constant 0 : index
    %c0_143 = arith.constant 0 : index
    %c0_144 = arith.constant 0 : index
    %138 = vector.load %arg10[%c0_142, %c0_143, %c0_144] : memref<1x64x32xf32, #tpu.memory_space<vmem>>, vector<1x64x32xf32>
    %139 = vector.shape_cast %138 : vector<1x64x32xf32> to vector<64x32xf32>
    %140 = vector.shape_cast %137 : vector<64x32xf32> to vector<1x64x32xf32>
    tpu.vector_store %arg10[%c0_142, %c0_143, %c0_144], %140 {strides = array<i32>} : memref<1x64x32xf32, #tpu.memory_space<vmem>>, vector<1x64x32xf32>,
    return
  }
  func.func @transform_0(%arg0: i32) -> (i32, i32, i32, i32) {
    %c0_i32 = arith.constant 0 : i32
    %c0_i32_0 = arith.constant 0 : i32
    %c0_i32_1 = arith.constant 0 : i32
    %c0_i32_2 = arith.constant 0 : i32
    return %arg0, %c0_i32, %c0_i32_0, %c0_i32_1 : i32, i32, i32, i32
  }
  func.func @transform_1(%arg0: i32) -> (i32, i32) {
    %c0_i32 = arith.constant 0 : i32
    %c0_i32_0 = arith.constant 0 : i32
    %c0_i32_1 = arith.constant 0 : i32
    return %c0_i32, %c0_i32_0 : i32, i32
  }
  func.func @transform_2(%arg0: i32) -> (i32, i32) {
    %c0_i32 = arith.constant 0 : i32
    %c0_i32_0 = arith.constant 0 : i32
    %c0_i32_1 = arith.constant 0 : i32
    return %c0_i32, %c0_i32_0 : i32, i32
  }
  func.func @transform_3(%arg0: i32) -> (i32, i32, i32) {
    %c0_i32 = arith.constant 0 : i32
    %c0_i32_0 = arith.constant 0 : i32
    %c0_i32_1 = arith.constant 0 : i32
    %c0_i32_2 = arith.constant 0 : i32
    return %c0_i32, %c0_i32_0, %c0_i32_1 : i32, i32, i32
  }
  func.func @transform_4(%arg0: i32) -> (i32, i32) {
    %c0_i32 = arith.constant 0 : i32
    %c0_i32_0 = arith.constant 0 : i32
    %c0_i32_1 = arith.constant 0 : i32
    return %c0_i32, %c0_i32_0 : i32, i32
  }
  func.func @transform_5(%arg0: i32) -> (i32, i32) {
    %c0_i32 = arith.constant 0 : i32
    %c0_i32_0 = arith.constant 0 : i32
    %c0_i32_1 = arith.constant 0 : i32
    return %c0_i32, %c0_i32_0 : i32, i32
  }
  func.func @transform_6(%arg0: i32) -> (i32, i32) {
    %c0_i32 = arith.constant 0 : i32
    %c0_i32_0 = arith.constant 0 : i32
    %c0_i32_1 = arith.constant 0 : i32
    return %c0_i32, %c0_i32_0 : i32, i32
  }
  func.func @transform_7(%arg0: i32) -> (i32, i32) {
    %c0_i32 = arith.constant 0 : i32
    %c0_i32_0 = arith.constant 0 : i32
    %c0_i32_1 = arith.constant 0 : i32
    return %c0_i32, %c0_i32_0 : i32, i32
  }
  func.func @transform_8(%arg0: i32) -> (i32, i32) {
    %c0_i32 = arith.constant 0 : i32
    %c0_i32_0 = arith.constant 0 : i32
    %c0_i32_1 = arith.constant 0 : i32
    return %c0_i32, %c0_i32_0 : i32, i32
  }
  func.func @transform_9(%arg0: i32) -> (i32, i32, i32) {
    %c0_i32 = arith.constant 0 : i32
    %c0_i32_0 = arith.constant 0 : i32
    %c0_i32_1 = arith.constant 0 : i32
    return %arg0, %c0_i32, %c0_i32_0 : i32, i32, i32
  }
  func.func @transform_10(%arg0: i32) -> (i32, i32, i32) {
    %c0_i32 = arith.constant 0 : i32
    %c0_i32_0 = arith.constant 0 : i32
    %c0_i32_1 = arith.constant 0 : i32
    return %arg0, %c0_i32, %c0_i32_0 : i32, i32, i32
  }
}

</mosaic_0001>

<llo_original>
// kernel: bottleneck_forward.1
$region0: #{bottleneck_forward.1}
  #allocation0 [shape = 'u32[]', space=smem, size = 0x4, offset = 0x4, fixed_abs, tag = 'smem constant byte address 0x4 - core index']
  #allocation1 [shape = 'u32[144,128]{1,0:T(1,128)}', space=vmem, size = 0x12000, scoped, tag = 'internal scratch']
  #allocation2 [shape = 'f32[9,9,8]{2,1,0:T(8,128)}', space=vmem, size = 0x12000, scoped, tag = 'scratch operand']
  #allocation3 [shape = 'f32[9,9,8]{2,1,0:T(8,128)}', space=vmem, size = 0x12000, scoped, tag = 'scratch operand']
  #allocation4 [shape = 'f32[9,9,8]{2,1,0:T(8,128)}', space=vmem, size = 0x12000, scoped, tag = 'scratch operand']
  #allocation5 [shape = 'f32[9,9,8]{2,1,0:T(8,128)}', space=vmem, size = 0x12000, scoped, tag = 'scratch operand']
  %s0 = inlined_call_operand.vmem [shape: bf16[2,4,64,16], index: 0, kind: input, shape index: {}]
  %s1 = inlined_call_operand.vmem [shape: bf16[16,8], index: 1, kind: input, shape index: {}]
  %s2 = inlined_call_operand.vmem [shape: f32[1,8], index: 2, kind: input, shape index: {}]
  %s3 = inlined_call_operand.vmem [shape: bf16[9,8,8], index: 3, kind: input, shape index: {}]
  %s4 = inlined_call_operand.vmem [shape: f32[1,8], index: 4, kind: input, shape index: {}]
  %s5 = inlined_call_operand.vmem [shape: bf16[8,32], index: 5, kind: input, shape index: {}]
  %s6 = inlined_call_operand.vmem [shape: f32[1,32], index: 6, kind: input, shape index: {}]
  %s7 = inlined_call_operand.vmem [shape: bf16[16,32], index: 7, kind: input, shape index: {}]
  %s8 = inlined_call_operand.vmem [shape: f32[1,32], index: 8, kind: input, shape index: {}]
  %s9 = inlined_call_operand.hbm [shape: f32[2,64,32], index: 9, kind: output, shape index: {0}]
  %s10 = inlined_call_operand.hbm [shape: f32[2,64,32], index: 10, kind: output, shape index: {1}]
  %11 = xla_tuple %s9, %s10
  %s12 = sld [smem:[#allocation0]]
  $region77: #{bottleneck_forward.1} parent=0
    _
  %s14 = ssub.s32 1, %s12
  %s15 = scalar_select 0, %s14, %s12
  $region1: #{bottleneck_forward.1} parent=0
    #allocation6 [shape = 'u8[65536]{0}', space=vmem, size = 0x10000, scoped, tag = 'output window, operand 0']
    #allocation7 [shape = 's32[2]{0}', space=sflag, size = 0x8, scoped, tag = 'scoped memory for bottleneck_forward.1']
    #allocation8 [shape = 'u8[65536]{0}', space=vmem, size = 0x10000, scoped, tag = 'output window, operand 1']
    #allocation9 [shape = 's32[2]{0}', space=sflag, size = 0x8, scoped, tag = 'scoped memory for bottleneck_forward.1']
    %16 = vsyncpa [#allocation7], 0
    %s17 = scalar_lea.sflag [#allocation7], 1
    %18 = vsyncpa %s17, 0
    %19 = vsyncpa [#allocation9], 0
    %s20 = scalar_lea.sflag [#allocation9], 1
    %21 = vsyncpa %s20, 0
    loop: start=0, step=1, limit=4
    $region2: #{bottleneck_forward.1} parent=1 // loop_pre_header
      _
    $region3: #{bottleneck_forward.1} parent=1 // loop_header
      %s23 = sphi 0, %s27
      %p24 = scmp.ge.s32.totalorder %s23, 4
      %s33 = sphi 0, %s35
      %s36 = sphi 0, %s33
      %s37 = sphi 0, %s36
      %s53 = sphi 0, %s37
      %s57 = sphi 0, %s57
      %s59 = sphi 0, %s57
      %s60 = sphi 0, %s59
      %s74 = sphi 0, %s60
      %s78 = sphi 0, %s78
      %s80 = sphi 0, %s78
      %s81 = sphi 0, %s80
      %s95 = sphi 0, %s81
      %s99 = sphi 0, %s99
      %s101 = sphi 0, %s99
      %s102 = sphi 0, %s101
      %s116 = sphi 0, %s102
      %s120 = sphi 0, %s120
      %s122 = sphi 0, %s120
      %s123 = sphi 0, %s122
      %s137 = sphi 0, %s123
      %s141 = sphi 0, %s141
      %s143 = sphi 0, %s141
      %s144 = sphi 0, %s143
      %s158 = sphi 0, %s144
      %s162 = sphi 0, %s162
      %s164 = sphi 0, %s162
      %s165 = sphi 0, %s164
      %s179 = sphi 0, %s165
      %s183 = sphi 0, %s183
      %s185 = sphi 0, %s183
      %s186 = sphi 0, %s185
      %s200 = sphi 0, %s186
      %s204 = sphi 0, %s204
      %s206 = sphi 0, %s204
      %s207 = sphi 0, %s206
      %s221 = sphi 0, %s207
      %s227 = sphi 0, %s229
      %s230 = sphi 0, %s227
      %s231 = sphi 0, %s230
      %s247 = sphi 0, %s231
      %s253 = sphi 0, %s255
      %s256 = sphi 0, %s253
      %s257 = sphi 0, %s256
      %s273 = sphi 0, %s257
    $region4: #{bottleneck_forward.1} parent=1 // loop_header_branch
      %26 = sbr.rel (%p24) target = $region8
    $region5: #{bottleneck_forward.1} parent=1 // loop_body
      %s28 = ssub.s32 %s23, 1
      %s29 = ssub.s32 %s23, 2
      %s30 = sadd.s32 %s23, 1
      %s31 = ssub.s32 %s23, %s30
      %p32 = scmp.eq.s32.totalorder %s31, 0
      %s34 = sadd.s32 %s33, 1
      %s35 = scalar_select %p32, %s33, %s34
      %p38 = pneg %p32
      %p39 = scmp.eq.s32.totalorder %s23, 1
      %p40 = por %p38, %p39
      %p41 = scmp.ne.s32.totalorder %s33, %s36
      %p42 = scmp.eq.s32.totalorder %s23, 0
      %p43 = por %p41, %p42
      %p44 = scmp.ne.s32.totalorder %s33, %s36
      %p45 = scmp.eq.s32.totalorder %s28, 1
      %p46 = por %p44, %p45
      %p47 = scmp.ne.s32.totalorder %s36, %s37
      %p48 = scmp.eq.s32.totalorder %s28, 0
      %p49 = por %p47, %p48
      %p50 = scmp.ne.s32.totalorder %s36, %s37
      %p51 = scmp.eq.s32.totalorder %s29, 1
      %p52 = por %p50, %p51
      %p54 = scmp.ne.s32.totalorder %s37, %s53
      %p55 = scmp.eq.s32.totalorder %s29, 0
      %p56 = por %p54, %p55
      %s58 = sadd.s32 %s57, 1
      %p61 = scmp.eq.s32.totalorder %s23, 1
      %p62 = scmp.ne.s32.totalorder %s57, %s59
      %p63 = scmp.eq.s32.totalorder %s23, 0
      %p64 = por %p62, %p63
      %p65 = scmp.ne.s32.totalorder %s57, %s59
      %p66 = scmp.eq.s32.totalorder %s28, 1
      %p67 = por %p65, %p66
      %p68 = scmp.ne.s32.totalorder %s59, %s60
      %p69 = scmp.eq.s32.totalorder %s28, 0
      %p70 = por %p68, %p69
      %p71 = scmp.ne.s32.totalorder %s59, %s60
      %p72 = scmp.eq.s32.totalorder %s29, 1
      %p73 = por %p71, %p72
      %p75 = scmp.ne.s32.totalorder %s60, %s74
      %p76 = scmp.eq.s32.totalorder %s29, 0
      %p77 = por %p75, %p76
      %s79 = sadd.s32 %s78, 1
      %p82 = scmp.eq.s32.totalorder %s23, 1
      %p83 = scmp.ne.s32.totalorder %s78, %s80
      %p84 = scmp.eq.s32.totalorder %s23, 0
      %p85 = por %p83, %p84
      %p86 = scmp.ne.s32.totalorder %s78, %s80
      %p87 = scmp.eq.s32.totalorder %s28, 1
      %p88 = por %p86, %p87
      %p89 = scmp.ne.s32.totalorder %s80, %s81
      %p90 = scmp.eq.s32.totalorder %s28, 0
      %p91 = por %p89, %p90
      %p92 = scmp.ne.s32.totalorder %s80, %s81
      %p93 = scmp.eq.s32.totalorder %s29, 1
      %p94 = por %p92, %p93
      %p96 = scmp.ne.s32.totalorder %s81, %s95
      %p97 = scmp.eq.s32.totalorder %s29, 0
      %p98 = por %p96, %p97
      %s100 = sadd.s32 %s99, 1
      %p103 = scmp.eq.s32.totalorder %s23, 1
      %p104 = scmp.ne.s32.totalorder %s99, %s101
      %p105 = scmp.eq.s32.totalorder %s23, 0
      %p106 = por %p104, %p105
      %p107 = scmp.ne.s32.totalorder %s99, %s101
      %p108 = scmp.eq.s32.totalorder %s28, 1
      %p109 = por %p107, %p108
      %p110 = scmp.ne.s32.totalorder %s101, %s102
      %p111 = scmp.eq.s32.totalorder %s28, 0
      %p112 = por %p110, %p111
      %p113 = scmp.ne.s32.totalorder %s101, %s102
      %p114 = scmp.eq.s32.totalorder %s29, 1
      %p115 = por %p113, %p114
      %p117 = scmp.ne.s32.totalorder %s102, %s116
      %p118 = scmp.eq.s32.totalorder %s29, 0
      %p119 = por %p117, %p118
      %s121 = sadd.s32 %s120, 1
      %p124 = scmp.eq.s32.totalorder %s23, 1
      %p125 = scmp.ne.s32.totalorder %s120, %s122
      %p126 = scmp.eq.s32.totalorder %s23, 0
      %p127 = por %p125, %p126
      %p128 = scmp.ne.s32.totalorder %s120, %s122
      %p129 = scmp.eq.s32.totalorder %s28, 1
      %p130 = por %p128, %p129
      %p131 = scmp.ne.s32.totalorder %s122, %s123
      %p132 = scmp.eq.s32.totalorder %s28, 0
      %p133 = por %p131, %p132
      %p134 = scmp.ne.s32.totalorder %s122, %s123
      %p135 = scmp.eq.s32.totalorder %s29, 1
      %p136 = por %p134, %p135
      %p138 = scmp.ne.s32.totalorder %s123, %s137
      %p139 = scmp.eq.s32.totalorder %s29, 0
      %p140 = por %p138, %p139
      %s142 = sadd.s32 %s141, 1
      %p145 = scmp.eq.s32.totalorder %s23, 1
      %p146 = scmp.ne.s32.totalorder %s141, %s143
      %p147 = scmp.eq.s32.totalorder %s23, 0
      %p148 = por %p146, %p147
      %p149 = scmp.ne.s32.totalorder %s141, %s143
      %p150 = scmp.eq.s32.totalorder %s28, 1
      %p151 = por %p149, %p150
      %p152 = scmp.ne.s32.totalorder %s143, %s144
      %p153 = scmp.eq.s32.totalorder %s28, 0
      %p154 = por %p152, %p153
      %p155 = scmp.ne.s32.totalorder %s143, %s144
      %p156 = scmp.eq.s32.totalorder %s29, 1
      %p157 = por %p155, %p156
      %p159 = scmp.ne.s32.totalorder %s144, %s158
      %p160 = scmp.eq.s32.totalorder %s29, 0
      %p161 = por %p159, %p160
      %s163 = sadd.s32 %s162, 1
      %p166 = scmp.eq.s32.totalorder %s23, 1
      %p167 = scmp.ne.s32.totalorder %s162, %s164
      %p168 = scmp.eq.s32.totalorder %s23, 0
      %p169 = por %p167, %p168
      %p170 = scmp.ne.s32.totalorder %s162, %s164
      %p171 = scmp.eq.s32.totalorder %s28, 1
      %p172 = por %p170, %p171
      %p173 = scmp.ne.s32.totalorder %s164, %s165
      %p174 = scmp.eq.s32.totalorder %s28, 0
      %p175 = por %p173, %p174
      %p176 = scmp.ne.s32.totalorder %s164, %s165
      %p177 = scmp.eq.s32.totalorder %s29, 1
      %p178 = por %p176, %p177
      %p180 = scmp.ne.s32.totalorder %s165, %s179
      %p181 = scmp.eq.s32.totalorder %s29, 0
      %p182 = por %p180, %p181
      %s184 = sadd.s32 %s183, 1
      %p187 = scmp.eq.s32.totalorder %s23, 1
      %p188 = scmp.ne.s32.totalorder %s183, %s185
      %p189 = scmp.eq.s32.totalorder %s23, 0
      %p190 = por %p188, %p189
      %p191 = scmp.ne.s32.totalorder %s183, %s185
      %p192 = scmp.eq.s32.totalorder %s28, 1
      %p193 = por %p191, %p192
      %p194 = scmp.ne.s32.totalorder %s185, %s186
      %p195 = scmp.eq.s32.totalorder %s28, 0
      %p196 = por %p194, %p195
      %p197 = scmp.ne.s32.totalorder %s185, %s186
      %p198 = scmp.eq.s32.totalorder %s29, 1
      %p199 = por %p197, %p198
      %p201 = scmp.ne.s32.totalorder %s186, %s200
      %p202 = scmp.eq.s32.totalorder %s29, 0
      %p203 = por %p201, %p202
      %s205 = sadd.s32 %s204, 1
      %p208 = scmp.eq.s32.totalorder %s23, 1
      %p209 = scmp.ne.s32.totalorder %s204, %s206
      %p210 = scmp.eq.s32.totalorder %s23, 0
      %p211 = por %p209, %p210
      %p212 = scmp.ne.s32.totalorder %s204, %s206
      %p213 = scmp.eq.s32.totalorder %s28, 1
      %p214 = por %p212, %p213
      %p215 = scmp.ne.s32.totalorder %s206, %s207
      %p216 = scmp.eq.s32.totalorder %s28, 0
      %p217 = por %p215, %p216
      %p218 = scmp.ne.s32.totalorder %s206, %s207
      %p219 = scmp.eq.s32.totalorder %s29, 1
      %p220 = por %p218, %p219
      %p222 = scmp.ne.s32.totalorder %s207, %s221
      %p223 = scmp.eq.s32.totalorder %s29, 0
      %p224 = por %p222, %p223
      %s225 = ssub.s32 %s23, %s30
      %p226 = scmp.eq.s32.totalorder %s225, 0
      %s228 = sadd.s32 %s227, 1
      %s229 = scalar_select %p226, %s227, %s228
      %p232 = pneg %p226
      %p233 = scmp.eq.s32.totalorder %s23, 1
      %p234 = por %p232, %p233
      %p235 = scmp.ne.s32.totalorder %s227, %s230
      %p236 = scmp.eq.s32.totalorder %s23, 0
      %p237 = por %p235, %p236
      %p238 = scmp.ne.s32.totalorder %s227, %s230
      %p239 = scmp.eq.s32.totalorder %s28, 1
      %p240 = por %p238, %p239
      %p241 = scmp.ne.s32.totalorder %s230, %s231
      %p242 = scmp.eq.s32.totalorder %s28, 0
      %p243 = por %p241, %p242
      %p244 = scmp.ne.s32.totalorder %s230, %s231
      %p245 = scmp.eq.s32.totalorder %s29, 1
      %p246 = por %p244, %p245
      %p248 = scmp.ne.s32.totalorder %s231, %s247
      %p249 = scmp.eq.s32.totalorder %s29, 0
      %p250 = por %p248, %p249
      %s251 = ssub.s32 %s23, %s30
      %p252 = scmp.eq.s32.totalorder %s251, 0
      %s254 = sadd.s32 %s253, 1
      %s255 = scalar_select %p252, %s253, %s254
      %p258 = pneg %p252
      %p259 = scmp.eq.s32.totalorder %s23, 1
      %p260 = por %p258, %p259
      %p261 = scmp.ne.s32.totalorder %s253, %s256
      %p262 = scmp.eq.s32.totalorder %s23, 0
      %p263 = por %p261, %p262
      %p264 = scmp.ne.s32.totalorder %s253, %s256
      %p265 = scmp.eq.s32.totalorder %s28, 1
      %p266 = por %p264, %p265
      %p267 = scmp.ne.s32.totalorder %s256, %s257
      %p268 = scmp.eq.s32.totalorder %s28, 0
      %p269 = por %p267, %p268
      %p270 = scmp.ne.s32.totalorder %s256, %s257
      %p271 = scmp.eq.s32.totalorder %s29, 1
      %p272 = por %p270, %p271
      %p274 = scmp.ne.s32.totalorder %s257, %s273
      %p275 = scmp.eq.s32.totalorder %s29, 0
      %p276 = por %p274, %p275
      %p277 = scmp.le.s32.totalorder 1, %s23
      %p278 = scmp.lt.s32.totalorder %s23, 3
      %p279 = pnand %p277, %p278
      %p280 = pneg %p279
      // Predicated region
      $region9: #{bottleneck_forward.1} parent=5 // pred_check
        _
      $region10: #{bottleneck_forward.1} parent=5 // pred_check_branch
        %282 = sbr.rel (%p279) target = $region12
      $region11: #{bottleneck_forward.1} parent=5 // pred_region
        %s283 = ssub.s32 %s23, 1
        // Predicated region
        $region13: #{bottleneck_forward.1} parent=11 // pred_check
          %p284 = pneg %p70
        $region14: #{bottleneck_forward.1} parent=11 // pred_check_branch
          %286 = sbr.rel (%p284) target = $region16
        $region15: #{bottleneck_forward.1} parent=11 // pred_region
          _
        $region16: #{bottleneck_forward.1} parent=11 // pred_fallthru
          _
        // Predicated region
        $region17: #{bottleneck_forward.1} parent=11 // pred_check
          %p287 = pneg %p91
        $region18: #{bottleneck_forward.1} parent=11 // pred_check_branch
          %289 = sbr.rel (%p287) target = $region20
        $region19: #{bottleneck_forward.1} parent=11 // pred_region
          _
        $region20: #{bottleneck_forward.1} parent=11 // pred_fallthru
          _
        // Predicated region
        $region21: #{bottleneck_forward.1} parent=11 // pred_check
          %p290 = pneg %p112
        $region22: #{bottleneck_forward.1} parent=11 // pred_check_branch
          %292 = sbr.rel (%p290) target = $region24
        $region23: #{bottleneck_forward.1} parent=11 // pred_region
          _
        $region24: #{bottleneck_forward.1} parent=11 // pred_fallthru
          _
        // Predicated region
        $region25: #{bottleneck_forward.1} parent=11 // pred_check
          %p293 = pneg %p133
        $region26: #{bottleneck_forward.1} parent=11 // pred_check_branch
          %295 = sbr.rel (%p293) target = $region28
        $region27: #{bottleneck_forward.1} parent=11 // pred_region
          _
        $region28: #{bottleneck_forward.1} parent=11 // pred_fallthru
          _
        // Predicated region
        $region29: #{bottleneck_forward.1} parent=11 // pred_check
          %p296 = pneg %p154
        $region30: #{bottleneck_forward.1} parent=11 // pred_check_branch
          %298 = sbr.rel (%p296) target = $region32
        $region31: #{bottleneck_forward.1} parent=11 // pred_region
          _
        $region32: #{bottleneck_forward.1} parent=11 // pred_fallthru
          _
        // Predicated region
        $region33: #{bottleneck_forward.1} parent=11 // pred_check
          %p299 = pneg %p175
        $region34: #{bottleneck_forward.1} parent=11 // pred_check_branch
          %301 = sbr.rel (%p299) target = $region36
        $region35: #{bottleneck_forward.1} parent=11 // pred_region
          _
        $region36: #{bottleneck_forward.1} parent=11 // pred_fallthru
          _
        // Predicated region
        $region37: #{bottleneck_forward.1} parent=11 // pred_check
          %p302 = pneg %p196
        $region38: #{bottleneck_forward.1} parent=11 // pred_check_branch
          %304 = sbr.rel (%p302) target = $region40
        $region39: #{bottleneck_forward.1} parent=11 // pred_region
          _
        $region40: #{bottleneck_forward.1} parent=11 // pred_fallthru
          _
        // Predicated region
        $region41: #{bottleneck_forward.1} parent=11 // pred_check
          %p305 = pneg %p217
        $region42: #{bottleneck_forward.1} parent=11 // pred_check_branch
          %307 = sbr.rel (%p305) target = $region44
        $region43: #{bottleneck_forward.1} parent=11 // pred_region
          _
        $region44: #{bottleneck_forward.1} parent=11 // pred_fallthru
          _
      $region12: #{bottleneck_forward.1} parent=5 // pred_fallthru
        _
      %p308 = scmp.lt.s32.totalorder %s23, 2
      // Predicated region
      $region45: #{bottleneck_forward.1} parent=5 // pred_check
        %p309 = pneg %p308
      $region46: #{bottleneck_forward.1} parent=5 // pred_check_branch
        %311 = sbr.rel (%p309) target = $region48
      $region47: #{bottleneck_forward.1} parent=5 // pred_region
        // Predicated region
        $region49: #{bottleneck_forward.1} parent=47 // pred_check
          %p312 = pneg %p43
        $region50: #{bottleneck_forward.1} parent=47 // pred_check_branch
          %314 = sbr.rel (%p312) target = $region52
        $region51: #{bottleneck_forward.1} parent=47 // pred_region
          %p315 = scmp.lt.s32.totalorder %s23, 1
          %s316 = scalar_select %p315, %s23, 1
          %s317 = smul.addr %s316, 32
          %s318 = smul.addr %s317, 4
          %s319 = scalar_lea.vmem %s0, %s318
        $region52: #{bottleneck_forward.1} parent=47 // pred_fallthru
          _
      $region48: #{bottleneck_forward.1} parent=5 // pred_fallthru
        _
      %p320 = scmp.le.s32.totalorder 1, %s23
      %p321 = scmp.lt.s32.totalorder %s23, 3
      %p322 = pnand %p320, %p321
      %p323 = pneg %p322
      // Predicated region
      $region53: #{bottleneck_forward.1} parent=5 // pred_check
        _
      $region54: #{bottleneck_forward.1} parent=5 // pred_check_branch
        %325 = sbr.rel (%p322) target = $region56
      $region55: #{bottleneck_forward.1} parent=5 // pred_region
        %s326 = ssub.s32 %s23, 1
        %p327 = scmp.lt.s32.totalorder %s28, 1
        %s328 = scalar_select %p327, %s28, 1
        %s329 = smul.addr %s328, 32
        %s330 = smul.addr %s329, 4
        %s331 = scalar_lea.vmem %s0, %s330
        %p332 = pneg %p49
        %p333 = pneg %p46
        %p334 = pneg %p70
        %p335 = pneg %p67
        %p336 = pneg %p91
        %p337 = pneg %p88
        %p338 = pneg %p112
        %p339 = pneg %p109
        %p340 = pneg %p133
        %p341 = pneg %p130
        %p342 = pneg %p154
        %p343 = pneg %p151
        %p344 = pneg %p175
        %p345 = pneg %p172
        %p346 = pneg %p196
        %p347 = pneg %p193
        %p348 = pneg %p217
        %p349 = pneg %p214
        %p350 = pneg %p243
        %p351 = pneg %p240
        %s352 = sand.u32 %s230, 1
        %s353 = scalar_lea.sflag [#allocation7], %s352
        %s354 = sand.u32 %s230, 1
        %s355 = smul.addr %s354, 64
        %s356 = scalar_lea.vmem [#allocation6], %s355
        %p357 = pneg %p269
        %p358 = pneg %p266
        %s359 = sand.u32 %s256, 1
        %s360 = scalar_lea.sflag [#allocation9], %s359
        %s361 = sand.u32 %s256, 1
        %s362 = smul.addr %s361, 64
        %s363 = scalar_lea.vmem [#allocation8], %s362
        %p364 = scmp.lt.s32.totalorder %s28, 1
        %s365 = scalar_select %p364, %s28, 1
        %s366 = smul.addr %s365, 32
        %s367 = smul.addr %s366, 4
        %s368 = scalar_lea.vmem %s0, %s367
        %vm370 = vcmask 64512
        %371 = vst.msk [vmem:[#allocation2] sm:$0xff] %vm370, 0.0
        %vm372 = vcmask 57344
        %373 = vst.msk [vmem:[#allocation2 + $0x8] sm:$0x1] %vm372, 0.0
        %374 = vst.msk [vmem:[#allocation2 + $0x10] sm:$0xff] %vm370, 0.0
        %375 = vst.msk [vmem:[#allocation2 + $0x18] sm:$0x1] %vm372, 0.0
        %376 = vst.msk [vmem:[#allocation2 + $0x20] sm:$0xff] %vm370, 0.0
        %377 = vst.msk [vmem:[#allocation2 + $0x28] sm:$0x1] %vm372, 0.0
        %378 = vst.msk [vmem:[#allocation2 + $0x30] sm:$0xff] %vm370, 0.0
        %379 = vst.msk [vmem:[#allocation2 + $0x38] sm:$0x1] %vm372, 0.0
        %380 = vst.msk [vmem:[#allocation2 + $0x40] sm:$0xff] %vm370, 0.0
        %381 = vst.msk [vmem:[#allocation2 + $0x48] sm:$0x1] %vm372, 0.0
        %382 = vst.msk [vmem:[#allocation2 + $0x50] sm:$0xff] %vm370, 0.0
        %383 = vst.msk [vmem:[#allocation2 + $0x58] sm:$0x1] %vm372, 0.0
        %384 = vst.msk [vmem:[#allocation2 + $0x60] sm:$0xff] %vm370, 0.0
        %385 = vst.msk [vmem:[#allocation2 + $0x68] sm:$0x1] %vm372, 0.0
        %386 = vst.msk [vmem:[#allocation2 + $0x70] sm:$0xff] %vm370, 0.0
        %387 = vst.msk [vmem:[#allocation2 + $0x78] sm:$0x1] %vm372, 0.0
        %388 = vst.msk [vmem:[#allocation2 + $0x80] sm:$0xff] %vm370, 0.0
        %389 = vst.msk [vmem:[#allocation2 + $0x88] sm:$0x1] %vm372, 0.0
        %s390 = scalar_lea.vmem %s368, 96
        %v391 = vld [vmem:[%s390] sm:$0xf]
        %v392 = vld [vmem:[%s390 + $0x4] sm:$0xf]
        %v393 = vld [vmem:[%s390 + $0x8] sm:$0xf]
        %v394 = vld [vmem:[%s390 + $0xc] sm:$0xf]
        %v395 = vld [vmem:[%s390 + $0x10] sm:$0xf]
        %v396 = vld [vmem:[%s390 + $0x14] sm:$0xf]
        %v397 = vld [vmem:[%s390 + $0x18] sm:$0xf]
        %v398 = vld [vmem:[%s390 + $0x1c] sm:$0xf]
        %v399 = vld [vmem:[%s1] sm:$0xf]
        %v400 = vld [vmem:[%s1 + $0x4] sm:$0xf]
        %v401 = vld [vmem:[%s2] sm:$0x1]
        %v403 = vlaneseq
        %v404 = vshrl.u32 %v403, 7
        %v405 = vsub.s32 0, %v404
        %v406 = vrot.slane %v401, %v405
        %v416 = vunpack.c.l.b16 %v391
        %v417 = vunpack.c.l.b16 %v392
        %v418 = vunpack.c.l.b16 %v393
        %v419 = vunpack.c.l.b16 %v394
        %v420 = vunpack.c.l.b16 %v395
        %v421 = vunpack.c.l.b16 %v396
        %v422 = vunpack.c.l.b16 %v397
        %v423 = vunpack.c.l.b16 %v398
        %v424 = vpack.c.b16 %v417, %v416
        %v425 = vpack.c.b16 %v419, %v418
        %v426 = vpack.c.b16 %v421, %v420
        %v427 = vpack.c.b16 %v423, %v422
        %v430 = vunpack.c.l.b16 %v399
        %v431 = vunpack.c.l.b16 %v400
        %v432 = vpack.c.b16 %v431, %v430
        %vm434 = vcmask 130048
        %v436 = vsel %vm434, %v424, 0
        %v439 = vsel %vm434, %v425, 0
        %v442 = vsel %vm434, %v426, 0
        %v445 = vsel %vm434, %v427, 0
        %447 = vmatprep.subr.bf16.mxu0 0
        %448 = vmatpush1.bf16.msra.mxu0 %v432
        %449 = vmatprep.subr.bf16.mxu0 0
        %450 = vmatpush1.bf16.msra.mxu0 0
        %451 = vmatprep.subr.bf16.mxu0 0
        %452 = vmatpush1.bf16.msra.mxu0 0
        %453 = vmatprep.subr.bf16.mxu0 0
        %454 = vmatpush1.bf16.msra.mxu0 0
        %455 = vmatprep.subr.bf16.mxu0 0
        %456 = vmatpush1.bf16.msra.mxu0 0
        %457 = vmatprep.subr.bf16.mxu0 0
        %458 = vmatpush1.bf16.msra.mxu0 0
        %459 = vmatprep.subr.bf16.mxu0 0
        %460 = vmatpush1.bf16.msra.mxu0 0
        %461 = vmatprep.subr.bf16.mxu0 0
        %462 = vmatpush1.bf16.msra.mxu0 0
        %463 = vmatprep.subr.bf16.mxu0 0
        %464 = vmatpush1.bf16.msra.mxu0 0
        %465 = vmatprep.subr.bf16.mxu0 0
        %466 = vmatpush1.bf16.msra.mxu0 0
        %467 = vmatprep.subr.bf16.mxu0 0
        %468 = vmatpush1.bf16.msra.mxu0 0
        %469 = vmatprep.subr.bf16.mxu0 0
        %470 = vmatpush1.bf16.msra.mxu0 0
        %471 = vmatprep.subr.bf16.mxu0 0
        %472 = vmatpush1.bf16.msra.mxu0 0
        %473 = vmatprep.subr.bf16.mxu0 0
        %474 = vmatpush1.bf16.msra.mxu0 0
        %475 = vmatprep.subr.bf16.mxu0 0
        %476 = vmatpush1.bf16.msra.mxu0 0
        %477 = vmatprep.subr.bf16.mxu0 0
        %478 = vmatpush1.bf16.msra.mxu0 0
        %479 = vmatprep.mubr.bf16.mxu0 0
        %480 = vmatmul.mubr.bf16.gmra.mrb[0].mxu0 %v436
        %v481 = vpop.f32.mrb[0].mxu0
        %v482 = vadd.f32 %v406, %v481
        %v483 = vpop.f32.mrb[0].mxu0
        %v484 = vpop.f32.mrb[0].mxu0
        %v485 = vadd.f32 %v406, %v484
        %v486 = vpop.f32.mrb[0].mxu0
        %487 = vmatprep.mubr.bf16.mxu0 0
        %488 = vmatmul.mubr.bf16.gmra.mrb[0].mxu0 %v439
        %v489 = vpop.f32.mrb[0].mxu0
        %v490 = vadd.f32 %v406, %v489
        %v491 = vpop.f32.mrb[0].mxu0
        %v492 = vpop.f32.mrb[0].mxu0
        %v493 = vadd.f32 %v406, %v492
        %v494 = vpop.f32.mrb[0].mxu0
        %495 = vmatprep.mubr.bf16.mxu0 0
        %496 = vmatmul.mubr.bf16.gmra.mrb[0].mxu0 %v442
        %v497 = vpop.f32.mrb[0].mxu0
        %v498 = vadd.f32 %v406, %v497
        %v499 = vpop.f32.mrb[0].mxu0
        %v500 = vpop.f32.mrb[0].mxu0
        %v501 = vadd.f32 %v406, %v500
        %v502 = vpop.f32.mrb[0].mxu0
        %503 = vmatprep.mubr.bf16.mxu0 0
        %504 = vmatmul.mubr.bf16.gmra.mrb[0].mxu0 %v445
        %v505 = vpop.f32.mrb[0].mxu0
        %v506 = vadd.f32 %v406, %v505
        %v507 = vpop.f32.mrb[0].mxu0
        %v508 = vpop.f32.mrb[0].mxu0
        %v509 = vadd.f32 %v406, %v508
        %v510 = vpop.f32.mrb[0].mxu0
        %511 = vdwg.mxu0
        %v512 = vmax.f32 %v482, 0.0
        %v513 = vmax.f32 %v485, 0.0
        %v514 = vmax.f32 %v490, 0.0
        %v515 = vmax.f32 %v493, 0.0
        %v516 = vmax.f32 %v498, 0.0
        %v517 = vmax.f32 %v501, 0.0
        %v518 = vmax.f32 %v506, 0.0
        %v519 = vmax.f32 %v509, 0.0
        %s520 = scalar_lea.vmem [#allocation2], 16
        %521 = vst.msk [vmem:[%s520 + $0x1] sm:$0xff] %vm370, %v512
        %522 = vst.msk [vmem:[%s520 + $0x11] sm:$0xff] %vm370, %v513
        %523 = vst.msk [vmem:[%s520 + $0x21] sm:$0xff] %vm370, %v514
        %524 = vst.msk [vmem:[%s520 + $0x31] sm:$0xff] %vm370, %v515
        %525 = vst.msk [vmem:[%s520 + $0x41] sm:$0xff] %vm370, %v516
        %526 = vst.msk [vmem:[%s520 + $0x51] sm:$0xff] %vm370, %v517
        %527 = vst.msk [vmem:[%s520 + $0x61] sm:$0xff] %vm370, %v518
        %528 = vst.msk [vmem:[%s520 + $0x71] sm:$0xff] %vm370, %v519
        %529 = vst.msk [vmem:[#allocation3] sm:$0xff] %vm370, 0.0
        %530 = vst.msk [vmem:[#allocation3 + $0x8] sm:$0x1] %vm372, 0.0
        %531 = vst.msk [vmem:[#allocation3 + $0x10] sm:$0xff] %vm370, 0.0
        %532 = vst.msk [vmem:[#allocation3 + $0x18] sm:$0x1] %vm372, 0.0
        %533 = vst.msk [vmem:[#allocation3 + $0x20] sm:$0xff] %vm370, 0.0
        %534 = vst.msk [vmem:[#allocation3 + $0x28] sm:$0x1] %vm372, 0.0
        %535 = vst.msk [vmem:[#allocation3 + $0x30] sm:$0xff] %vm370, 0.0
        %536 = vst.msk [vmem:[#allocation3 + $0x38] sm:$0x1] %vm372, 0.0
        %537 = vst.msk [vmem:[#allocation3 + $0x40] sm:$0xff] %vm370, 0.0
        %538 = vst.msk [vmem:[#allocation3 + $0x48] sm:$0x1] %vm372, 0.0
        %539 = vst.msk [vmem:[#allocation3 + $0x50] sm:$0xff] %vm370, 0.0
        %540 = vst.msk [vmem:[#allocation3 + $0x58] sm:$0x1] %vm372, 0.0
        %541 = vst.msk [vmem:[#allocation3 + $0x60] sm:$0xff] %vm370, 0.0
        %542 = vst.msk [vmem:[#allocation3 + $0x68] sm:$0x1] %vm372, 0.0
        %543 = vst.msk [vmem:[#allocation3 + $0x70] sm:$0xff] %vm370, 0.0
        %544 = vst.msk [vmem:[#allocation3 + $0x78] sm:$0x1] %vm372, 0.0
        %545 = vst.msk [vmem:[#allocation3 + $0x80] sm:$0xff] %vm370, 0.0
        %546 = vst.msk [vmem:[#allocation3 + $0x88] sm:$0x1] %vm372, 0.0
        %s547 = scalar_lea.vmem %s368, 64
        %v548 = vld [vmem:[%s547] sm:$0xf]
        %v549 = vld [vmem:[%s547 + $0x4] sm:$0xf]
        %v550 = vld [vmem:[%s547 + $0x8] sm:$0xf]
        %v551 = vld [vmem:[%s547 + $0xc] sm:$0xf]
        %v552 = vld [vmem:[%s547 + $0x10] sm:$0xf]
        %v553 = vld [vmem:[%s547 + $0x14] sm:$0xf]
        %v554 = vld [vmem:[%s547 + $0x18] sm:$0xf]
        %v555 = vld [vmem:[%s547 + $0x1c] sm:$0xf]
        %v556 = vld [vmem:[%s1] sm:$0xf]
        %v557 = vld [vmem:[%s1 + $0x4] sm:$0xf]
        %v558 = vld [vmem:[%s2] sm:$0x1]
        %v560 = vlaneseq
        %v561 = vshrl.u32 %v560, 7
        %v562 = vsub.s32 0, %v561
        %v563 = vrot.slane %v558, %v562
        %v573 = vunpack.c.l.b16 %v548
        %v574 = vunpack.c.l.b16 %v549
        %v575 = vunpack.c.l.b16 %v550
        %v576 = vunpack.c.l.b16 %v551
        %v577 = vunpack.c.l.b16 %v552
        %v578 = vunpack.c.l.b16 %v553
        %v579 = vunpack.c.l.b16 %v554
        %v580 = vunpack.c.l.b16 %v555
        %v581 = vpack.c.b16 %v574, %v573
        %v582 = vpack.c.b16 %v576, %v575
        %v583 = vpack.c.b16 %v578, %v577
        %v584 = vpack.c.b16 %v580, %v579
        %v587 = vunpack.c.l.b16 %v556
        %v588 = vunpack.c.l.b16 %v557
        %v589 = vpack.c.b16 %v588, %v587
        %v592 = vsel %vm434, %v581, 0
        %v595 = vsel %vm434, %v582, 0
        %v598 = vsel %vm434, %v583, 0
        %v601 = vsel %vm434, %v584, 0
        %603 = vmatprep.subr.bf16.mxu0 0
        %604 = vmatpush1.bf16.msra.mxu0 %v589
        %605 = vmatprep.subr.bf16.mxu0 0
        %606 = vmatpush1.bf16.msra.mxu0 0
        %607 = vmatprep.subr.bf16.mxu0 0
        %608 = vmatpush1.bf16.msra.mxu0 0
        %609 = vmatprep.subr.bf16.mxu0 0
        %610 = vmatpush1.bf16.msra.mxu0 0
        %611 = vmatprep.subr.bf16.mxu0 0
        %612 = vmatpush1.bf16.msra.mxu0 0
        %613 = vmatprep.subr.bf16.mxu0 0
        %614 = vmatpush1.bf16.msra.mxu0 0
        %615 = vmatprep.subr.bf16.mxu0 0
        %616 = vmatpush1.bf16.msra.mxu0 0
        %617 = vmatprep.subr.bf16.mxu0 0
        %618 = vmatpush1.bf16.msra.mxu0 0
        %619 = vmatprep.subr.bf16.mxu0 0
        %620 = vmatpush1.bf16.msra.mxu0 0
        %621 = vmatprep.subr.bf16.mxu0 0
        %622 = vmatpush1.bf16.msra.mxu0 0
        %623 = vmatprep.subr.bf16.mxu0 0
        %624 = vmatpush1.bf16.msra.mxu0 0
        %625 = vmatprep.subr.bf16.mxu0 0
        %626 = vmatpush1.bf16.msra.mxu0 0
        %627 = vmatprep.subr.bf16.mxu0 0
        %628 = vmatpush1.bf16.msra.mxu0 0
        %629 = vmatprep.subr.bf16.mxu0 0
        %630 = vmatpush1.bf16.msra.mxu0 0
        %631 = vmatprep.subr.bf16.mxu0 0
        %632 = vmatpush1.bf16.msra.mxu0 0
        %633 = vmatprep.subr.bf16.mxu0 0
        %634 = vmatpush1.bf16.msra.mxu0 0
        %635 = vmatprep.mubr.bf16.mxu0 0
        %636 = vmatmul.mubr.bf16.gmra.mrb[0].mxu0 %v592
        %v637 = vpop.f32.mrb[0].mxu0
        %v638 = vadd.f32 %v563, %v637
        %v639 = vpop.f32.mrb[0].mxu0
        %v640 = vpop.f32.mrb[0].mxu0
        %v641 = vadd.f32 %v563, %v640
        %v642 = vpop.f32.mrb[0].mxu0
        %643 = vmatprep.mubr.bf16.mxu0 0
        %644 = vmatmul.mubr.bf16.gmra.mrb[0].mxu0 %v595
        %v645 = vpop.f32.mrb[0].mxu0
        %v646 = vadd.f32 %v563, %v645
        %v647 = vpop.f32.mrb[0].mxu0
        %v648 = vpop.f32.mrb[0].mxu0
        %v649 = vadd.f32 %v563, %v648
        %v650 = vpop.f32.mrb[0].mxu0
        %651 = vmatprep.mubr.bf16.mxu0 0
        %652 = vmatmul.mubr.bf16.gmra.mrb[0].mxu0 %v598
        %v653 = vpop.f32.mrb[0].mxu0
        %v654 = vadd.f32 %v563, %v653
        %v655 = vpop.f32.mrb[0].mxu0
        %v656 = vpop.f32.mrb[0].mxu0
        %v657 = vadd.f32 %v563, %v656
        %v658 = vpop.f32.mrb[0].mxu0
        %659 = vmatprep.mubr.bf16.mxu0 0
        %660 = vmatmul.mubr.bf16.gmra.mrb[0].mxu0 %v601
        %v661 = vpop.f32.mrb[0].mxu0
        %v662 = vadd.f32 %v563, %v661
        %v663 = vpop.f32.mrb[0].mxu0
        %v664 = vpop.f32.mrb[0].mxu0
        %v665 = vadd.f32 %v563, %v664
        %v666 = vpop.f32.mrb[0].mxu0
        %667 = vdwg.mxu0
        %v668 = vmax.f32 %v638, 0.0
        %v669 = vmax.f32 %v641, 0.0
        %v670 = vmax.f32 %v646, 0.0
        %v671 = vmax.f32 %v649, 0.0
        %v672 = vmax.f32 %v654, 0.0
        %v673 = vmax.f32 %v657, 0.0
        %v674 = vmax.f32 %v662, 0.0
        %v675 = vmax.f32 %v665, 0.0
        %s676 = scalar_lea.vmem [#allocation3], 16
        %677 = vst.msk [vmem:[%s676] sm:$0xff] %vm370, %v668
        %678 = vst.msk [vmem:[%s676 + $0x10] sm:$0xff] %vm370, %v669
        %679 = vst.msk [vmem:[%s676 + $0x20] sm:$0xff] %vm370, %v670
        %680 = vst.msk [vmem:[%s676 + $0x30] sm:$0xff] %vm370, %v671
        %681 = vst.msk [vmem:[%s676 + $0x40] sm:$0xff] %vm370, %v672
        %682 = vst.msk [vmem:[%s676 + $0x50] sm:$0xff] %vm370, %v673
        %683 = vst.msk [vmem:[%s676 + $0x60] sm:$0xff] %vm370, %v674
        %684 = vst.msk [vmem:[%s676 + $0x70] sm:$0xff] %vm370, %v675
        %685 = vst.msk [vmem:[#allocation4] sm:$0xff] %vm370, 0.0
        %686 = vst.msk [vmem:[#allocation4 + $0x8] sm:$0x1] %vm372, 0.0
        %687 = vst.msk [vmem:[#allocation4 + $0x10] sm:$0xff] %vm370, 0.0
        %688 = vst.msk [vmem:[#allocation4 + $0x18] sm:$0x1] %vm372, 0.0
        %689 = vst.msk [vmem:[#allocation4 + $0x20] sm:$0xff] %vm370, 0.0
        %690 = vst.msk [vmem:[#allocation4 + $0x28] sm:$0x1] %vm372, 0.0
        %691 = vst.msk [vmem:[#allocation4 + $0x30] sm:$0xff] %vm370, 0.0
        %692 = vst.msk [vmem:[#allocation4 + $0x38] sm:$0x1] %vm372, 0.0
        %693 = vst.msk [vmem:[#allocation4 + $0x40] sm:$0xff] %vm370, 0.0
        %694 = vst.msk [vmem:[#allocation4 + $0x48] sm:$0x1] %vm372, 0.0
        %695 = vst.msk [vmem:[#allocation4 + $0x50] sm:$0xff] %vm370, 0.0
        %696 = vst.msk [vmem:[#allocation4 + $0x58] sm:$0x1] %vm372, 0.0
        %697 = vst.msk [vmem:[#allocation4 + $0x60] sm:$0xff] %vm370, 0.0
        %698 = vst.msk [vmem:[#allocation4 + $0x68] sm:$0x1] %vm372, 0.0
        %699 = vst.msk [vmem:[#allocation4 + $0x70] sm:$0xff] %vm370, 0.0
        %700 = vst.msk [vmem:[#allocation4 + $0x78] sm:$0x1] %vm372, 0.0
        %701 = vst.msk [vmem:[#allocation4 + $0x80] sm:$0xff] %vm370, 0.0
        %702 = vst.msk [vmem:[#allocation4 + $0x88] sm:$0x1] %vm372, 0.0
        %s703 = scalar_lea.vmem %s368, 32
        %v704 = vld [vmem:[%s703] sm:$0xf]
        %v705 = vld [vmem:[%s703 + $0x4] sm:$0xf]
        %v706 = vld [vmem:[%s703 + $0x8] sm:$0xf]
        %v707 = vld [vmem:[%s703 + $0xc] sm:$0xf]
        %v708 = vld [vmem:[%s703 + $0x10] sm:$0xf]
        %v709 = vld [vmem:[%s703 + $0x14] sm:$0xf]
        %v710 = vld [vmem:[%s703 + $0x18] sm:$0xf]
        %v711 = vld [vmem:[%s703 + $0x1c] sm:$0xf]
        %v712 = vld [vmem:[%s1] sm:$0xf]
        %v713 = vld [vmem:[%s1 + $0x4] sm:$0xf]
        %v714 = vld [vmem:[%s2] sm:$0x1]
        %v716 = vlaneseq
        %v717 = vshrl.u32 %v716, 7
        %v718 = vsub.s32 0, %v717
        %v719 = vrot.slane %v714, %v718
        %v729 = vunpack.c.l.b16 %v704
        %v730 = vunpack.c.l.b16 %v705
        %v731 = vunpack.c.l.b16 %v706
        %v732 = vunpack.c.l.b16 %v707
        %v733 = vunpack.c.l.b16 %v708
        %v734 = vunpack.c.l.b16 %v709
        %v735 = vunpack.c.l.b16 %v710
        %v736 = vunpack.c.l.b16 %v711
        %v737 = vpack.c.b16 %v730, %v729
        %v738 = vpack.c.b16 %v732, %v731
        %v739 = vpack.c.b16 %v734, %v733
        %v740 = vpack.c.b16 %v736, %v735
        %v743 = vunpack.c.l.b16 %v712
        %v744 = vunpack.c.l.b16 %v713
        %v745 = vpack.c.b16 %v744, %v743
        %v748 = vsel %vm434, %v737, 0
        %v751 = vsel %vm434, %v738, 0
        %v754 = vsel %vm434, %v739, 0
        %v757 = vsel %vm434, %v740, 0
        %759 = vmatprep.subr.bf16.mxu0 0
        %760 = vmatpush1.bf16.msra.mxu0 %v745
        %761 = vmatprep.subr.bf16.mxu0 0
        %762 = vmatpush1.bf16.msra.mxu0 0
        %763 = vmatprep.subr.bf16.mxu0 0
        %764 = vmatpush1.bf16.msra.mxu0 0
        %765 = vmatprep.subr.bf16.mxu0 0
        %766 = vmatpush1.bf16.msra.mxu0 0
        %767 = vmatprep.subr.bf16.mxu0 0
        %768 = vmatpush1.bf16.msra.mxu0 0
        %769 = vmatprep.subr.bf16.mxu0 0
        %770 = vmatpush1.bf16.msra.mxu0 0
        %771 = vmatprep.subr.bf16.mxu0 0
        %772 = vmatpush1.bf16.msra.mxu0 0
        %773 = vmatprep.subr.bf16.mxu0 0
        %774 = vmatpush1.bf16.msra.mxu0 0
        %775 = vmatprep.subr.bf16.mxu0 0
        %776 = vmatpush1.bf16.msra.mxu0 0
        %777 = vmatprep.subr.bf16.mxu0 0
        %778 = vmatpush1.bf16.msra.mxu0 0
        %779 = vmatprep.subr.bf16.mxu0 0
        %780 = vmatpush1.bf16.msra.mxu0 0
        %781 = vmatprep.subr.bf16.mxu0 0
        %782 = vmatpush1.bf16.msra.mxu0 0
        %783 = vmatprep.subr.bf16.mxu0 0
        %784 = vmatpush1.bf16.msra.mxu0 0
        %785 = vmatprep.subr.bf16.mxu0 0
        %786 = vmatpush1.bf16.msra.mxu0 0
        %787 = vmatprep.subr.bf16.mxu0 0
        %788 = vmatpush1.bf16.msra.mxu0 0
        %789 = vmatprep.subr.bf16.mxu0 0
        %790 = vmatpush1.bf16.msra.mxu0 0
        %791 = vmatprep.mubr.bf16.mxu0 0
        %792 = vmatmul.mubr.bf16.gmra.mrb[0].mxu0 %v748
        %v793 = vpop.f32.mrb[0].mxu0
        %v794 = vadd.f32 %v719, %v793
        %v795 = vpop.f32.mrb[0].mxu0
        %v796 = vpop.f32.mrb[0].mxu0
        %v797 = vadd.f32 %v719, %v796
        %v798 = vpop.f32.mrb[0].mxu0
        %799 = vmatprep.mubr.bf16.mxu0 0
        %800 = vmatmul.mubr.bf16.gmra.mrb[0].mxu0 %v751
        %v801 = vpop.f32.mrb[0].mxu0
        %v802 = vadd.f32 %v719, %v801
        %v803 = vpop.f32.mrb[0].mxu0
        %v804 = vpop.f32.mrb[0].mxu0
        %v805 = vadd.f32 %v719, %v804
        %v806 = vpop.f32.mrb[0].mxu0
        %807 = vmatprep.mubr.bf16.mxu0 0
        %808 = vmatmul.mubr.bf16.gmra.mrb[0].mxu0 %v754
        %v809 = vpop.f32.mrb[0].mxu0
        %v810 = vadd.f32 %v719, %v809
        %v811 = vpop.f32.mrb[0].mxu0
        %v812 = vpop.f32.mrb[0].mxu0
        %v813 = vadd.f32 %v719, %v812
        %v814 = vpop.f32.mrb[0].mxu0
        %815 = vmatprep.mubr.bf16.mxu0 0
        %816 = vmatmul.mubr.bf16.gmra.mrb[0].mxu0 %v757
        %v817 = vpop.f32.mrb[0].mxu0
        %v818 = vadd.f32 %v719, %v817
        %v819 = vpop.f32.mrb[0].mxu0
        %v820 = vpop.f32.mrb[0].mxu0
        %v821 = vadd.f32 %v719, %v820
        %v822 = vpop.f32.mrb[0].mxu0
        %823 = vdwg.mxu0
        %v824 = vmax.f32 %v794, 0.0
        %v825 = vmax.f32 %v797, 0.0
        %v826 = vmax.f32 %v802, 0.0
        %v827 = vmax.f32 %v805, 0.0
        %v828 = vmax.f32 %v810, 0.0
        %v829 = vmax.f32 %v813, 0.0
        %v830 = vmax.f32 %v818, 0.0
        %v831 = vmax.f32 %v821, 0.0
        %832 = vst.msk [vmem:[#allocation4 + $0x1] sm:$0xff] %vm370, %v824
        %833 = vst.msk [vmem:[#allocation4 + $0x11] sm:$0xff] %vm370, %v825
        %834 = vst.msk [vmem:[#allocation4 + $0x21] sm:$0xff] %vm370, %v826
        %835 = vst.msk [vmem:[#allocation4 + $0x31] sm:$0xff] %vm370, %v827
        %836 = vst.msk [vmem:[#allocation4 + $0x41] sm:$0xff] %vm370, %v828
        %837 = vst.msk [vmem:[#allocation4 + $0x51] sm:$0xff] %vm370, %v829
        %838 = vst.msk [vmem:[#allocation4 + $0x61] sm:$0xff] %vm370, %v830
        %839 = vst.msk [vmem:[#allocation4 + $0x71] sm:$0xff] %vm370, %v831
        %840 = vst.msk [vmem:[#allocation5] sm:$0xff] %vm370, 0.0
        %841 = vst.msk [vmem:[#allocation5 + $0x8] sm:$0x1] %vm372, 0.0
        %842 = vst.msk [vmem:[#allocation5 + $0x10] sm:$0xff] %vm370, 0.0
        %843 = vst.msk [vmem:[#allocation5 + $0x18] sm:$0x1] %vm372, 0.0
        %844 = vst.msk [vmem:[#allocation5 + $0x20] sm:$0xff] %vm370, 0.0
        %845 = vst.msk [vmem:[#allocation5 + $0x28] sm:$0x1] %vm372, 0.0
        %846 = vst.msk [vmem:[#allocation5 + $0x30] sm:$0xff] %vm370, 0.0
        %847 = vst.msk [vmem:[#allocation5 + $0x38] sm:$0x1] %vm372, 0.0
        %848 = vst.msk [vmem:[#allocation5 + $0x40] sm:$0xff] %vm370, 0.0
        %849 = vst.msk [vmem:[#allocation5 + $0x48] sm:$0x1] %vm372, 0.0
        %850 = vst.msk [vmem:[#allocation5 + $0x50] sm:$0xff] %vm370, 0.0
        %851 = vst.msk [vmem:[#allocation5 + $0x58] sm:$0x1] %vm372, 0.0
        %852 = vst.msk [vmem:[#allocation5 + $0x60] sm:$0xff] %vm370, 0.0
        %853 = vst.msk [vmem:[#allocation5 + $0x68] sm:$0x1] %vm372, 0.0
        %854 = vst.msk [vmem:[#allocation5 + $0x70] sm:$0xff] %vm370, 0.0
        %855 = vst.msk [vmem:[#allocation5 + $0x78] sm:$0x1] %vm372, 0.0
        %856 = vst.msk [vmem:[#allocation5 + $0x80] sm:$0xff] %vm370, 0.0
        %857 = vst.msk [vmem:[#allocation5 + $0x88] sm:$0x1] %vm372, 0.0
        %v858 = vld [vmem:[%s368] sm:$0xf]
        %v859 = vld [vmem:[%s368 + $0x4] sm:$0xf]
        %v860 = vld [vmem:[%s368 + $0x8] sm:$0xf]
        %v861 = vld [vmem:[%s368 + $0xc] sm:$0xf]
        %v862 = vld [vmem:[%s368 + $0x10] sm:$0xf]
        %v863 = vld [vmem:[%s368 + $0x14] sm:$0xf]
        %v864 = vld [vmem:[%s368 + $0x18] sm:$0xf]
        %v865 = vld [vmem:[%s368 + $0x1c] sm:$0xf]
        %v866 = vld [vmem:[%s1] sm:$0xf]
        %v867 = vld [vmem:[%s1 + $0x4] sm:$0xf]
        %v868 = vld [vmem:[%s2] sm:$0x1]
        %v870 = vlaneseq
        %v871 = vshrl.u32 %v870, 7
        %v872 = vsub.s32 0, %v871
        %v873 = vrot.slane %v868, %v872
        %v883 = vunpack.c.l.b16 %v858
        %v884 = vunpack.c.l.b16 %v859
        %v885 = vunpack.c.l.b16 %v860
        %v886 = vunpack.c.l.b16 %v861
        %v887 = vunpack.c.l.b16 %v862
        %v888 = vunpack.c.l.b16 %v863
        %v889 = vunpack.c.l.b16 %v864
        %v890 = vunpack.c.l.b16 %v865
        %v891 = vpack.c.b16 %v884, %v883
        %v892 = vpack.c.b16 %v886, %v885
        %v893 = vpack.c.b16 %v888, %v887
        %v894 = vpack.c.b16 %v890, %v889
        %v897 = vunpack.c.l.b16 %v866
        %v898 = vunpack.c.l.b16 %v867
        %v899 = vpack.c.b16 %v898, %v897
        %v902 = vsel %vm434, %v891, 0
        %v905 = vsel %vm434, %v892, 0
        %v908 = vsel %vm434, %v893, 0
        %v911 = vsel %vm434, %v894, 0
        %913 = vmatprep.subr.bf16.mxu0 0
        %914 = vmatpush1.bf16.msra.mxu0 %v899
        %915 = vmatprep.subr.bf16.mxu0 0
        %916 = vmatpush1.bf16.msra.mxu0 0
        %917 = vmatprep.subr.bf16.mxu0 0
        %918 = vmatpush1.bf16.msra.mxu0 0
        %919 = vmatprep.subr.bf16.mxu0 0
        %920 = vmatpush1.bf16.msra.mxu0 0
        %921 = vmatprep.subr.bf16.mxu0 0
        %922 = vmatpush1.bf16.msra.mxu0 0
        %923 = vmatprep.subr.bf16.mxu0 0
        %924 = vmatpush1.bf16.msra.mxu0 0
        %925 = vmatprep.subr.bf16.mxu0 0
        %926 = vmatpush1.bf16.msra.mxu0 0
        %927 = vmatprep.subr.bf16.mxu0 0
        %928 = vmatpush1.bf16.msra.mxu0 0
        %929 = vmatprep.subr.bf16.mxu0 0
        %930 = vmatpush1.bf16.msra.mxu0 0
        %931 = vmatprep.subr.bf16.mxu0 0
        %932 = vmatpush1.bf16.msra.mxu0 0
        %933 = vmatprep.subr.bf16.mxu0 0
        %934 = vmatpush1.bf16.msra.mxu0 0
        %935 = vmatprep.subr.bf16.mxu0 0
        %936 = vmatpush1.bf16.msra.mxu0 0
        %937 = vmatprep.subr.bf16.mxu0 0
        %938 = vmatpush1.bf16.msra.mxu0 0
        %939 = vmatprep.subr.bf16.mxu0 0
        %940 = vmatpush1.bf16.msra.mxu0 0
        %941 = vmatprep.subr.bf16.mxu0 0
        %942 = vmatpush1.bf16.msra.mxu0 0
        %943 = vmatprep.subr.bf16.mxu0 0
        %944 = vmatpush1.bf16.msra.mxu0 0
        %945 = vmatprep.mubr.bf16.mxu0 0
        %946 = vmatmul.mubr.bf16.gmra.mrb[0].mxu0 %v902
        %v947 = vpop.f32.mrb[0].mxu0
        %v948 = vadd.f32 %v873, %v947
        %v949 = vpop.f32.mrb[0].mxu0
        %v950 = vpop.f32.mrb[0].mxu0
        %v951 = vadd.f32 %v873, %v950
        %v952 = vpop.f32.mrb[0].mxu0
        %953 = vmatprep.mubr.bf16.mxu0 0
        %954 = vmatmul.mubr.bf16.gmra.mrb[0].mxu0 %v905
        %v955 = vpop.f32.mrb[0].mxu0
        %v956 = vadd.f32 %v873, %v955
        %v957 = vpop.f32.mrb[0].mxu0
        %v958 = vpop.f32.mrb[0].mxu0
        %v959 = vadd.f32 %v873, %v958
        %v960 = vpop.f32.mrb[0].mxu0
        %961 = vmatprep.mubr.bf16.mxu0 0
        %962 = vmatmul.mubr.bf16.gmra.mrb[0].mxu0 %v908
        %v963 = vpop.f32.mrb[0].mxu0
        %v964 = vadd.f32 %v873, %v963
        %v965 = vpop.f32.mrb[0].mxu0
        %v966 = vpop.f32.mrb[0].mxu0
        %v967 = vadd.f32 %v873, %v966
        %v968 = vpop.f32.mrb[0].mxu0
        %969 = vmatprep.mubr.bf16.mxu0 0
        %970 = vmatmul.mubr.bf16.gmra.mrb[0].mxu0 %v911
        %v971 = vpop.f32.mrb[0].mxu0
        %v972 = vadd.f32 %v873, %v971
        %v973 = vpop.f32.mrb[0].mxu0
        %v974 = vpop.f32.mrb[0].mxu0
        %v975 = vadd.f32 %v873, %v974
        %v976 = vpop.f32.mrb[0].mxu0
        %977 = vdwg.mxu0
        %v978 = vmax.f32 %v948, 0.0
        %v979 = vmax.f32 %v951, 0.0
        %v980 = vmax.f32 %v956, 0.0
        %v981 = vmax.f32 %v959, 0.0
        %v982 = vmax.f32 %v964, 0.0
        %v983 = vmax.f32 %v967, 0.0
        %v984 = vmax.f32 %v972, 0.0
        %v985 = vmax.f32 %v975, 0.0
        %986 = vst.msk [vmem:[#allocation5] sm:$0xff] %vm370, %v978
        %987 = vst.msk [vmem:[#allocation5 + $0x10] sm:$0xff] %vm370, %v979
        %988 = vst.msk [vmem:[#allocation5 + $0x20] sm:$0xff] %vm370, %v980
        %989 = vst.msk [vmem:[#allocation5 + $0x30] sm:$0xff] %vm370, %v981
        %990 = vst.msk [vmem:[#allocation5 + $0x40] sm:$0xff] %vm370, %v982
        %991 = vst.msk [vmem:[#allocation5 + $0x50] sm:$0xff] %vm370, %v983
        %992 = vst.msk [vmem:[#allocation5 + $0x60] sm:$0xff] %vm370, %v984
        %993 = vst.msk [vmem:[#allocation5 + $0x70] sm:$0xff] %vm370, %v985
        %v994 = vld [vmem:[#allocation2] sm:$0xff]
        %v995 = vld [vmem:[#allocation2 + $0x10] sm:$0xff]
        %v996 = vld [vmem:[#allocation2 + $0x20] sm:$0xff]
        %v997 = vld [vmem:[#allocation2 + $0x30] sm:$0xff]
        %v998 = vld [vmem:[#allocation2 + $0x40] sm:$0xff]
        %v999 = vld [vmem:[#allocation2 + $0x50] sm:$0xff]
        %v1000 = vld [vmem:[#allocation2 + $0x60] sm:$0xff]
        %v1001 = vld [vmem:[#allocation2 + $0x70] sm:$0xff]
        %v1002 = vpack.c.bf16 %v995, %v994
        %v1003 = vpack.c.bf16 %v997, %v996
        %v1004 = vpack.c.bf16 %v999, %v998
        %v1005 = vpack.c.bf16 %v1001, %v1000
        %v1006 = vld [vmem:[%s3] sm:$0xf]
        %v1007 = vld [vmem:[#allocation3] sm:$0xff]
        %v1008 = vld [vmem:[#allocation3 + $0x10] sm:$0xff]
        %v1009 = vld [vmem:[#allocation3 + $0x20] sm:$0xff]
        %v1010 = vld [vmem:[#allocation3 + $0x30] sm:$0xff]
        %v1011 = vld [vmem:[#allocation3 + $0x40] sm:$0xff]
        %v1012 = vld [vmem:[#allocation3 + $0x50] sm:$0xff]
        %v1013 = vld [vmem:[#allocation3 + $0x60] sm:$0xff]
        %v1014 = vld [vmem:[#allocation3 + $0x70] sm:$0xff]
        %v1015 = vpack.c.bf16 %v1008, %v1007
        %v1016 = vpack.c.bf16 %v1010, %v1009
        %v1017 = vpack.c.bf16 %v1012, %v1011
        %v1018 = vpack.c.bf16 %v1014, %v1013
        %s1019 = scalar_lea.vmem %s3, 4
        %v1020 = vld [vmem:[%s1019] sm:$0xf]
        %v1022 = vsel %vm370, %v1015, 0
        %v1025 = vsel %vm370, %v1016, 0
        %v1028 = vsel %vm370, %v1017, 0
        %v1031 = vsel %vm370, %v1018, 0
        %vm1033 = vcmask 1043456
        %v1035 = vsel %vm1033, %v1020, 0
        %1037 = vmatprep.subr.bf16.mxu0 0
        %1038 = vmatpush1.bf16.msra.mxu0 %v1035
        %1039 = vmatprep.subr.bf16.mxu0 0
        %1040 = vmatpush1.bf16.msra.mxu0 0
        %1041 = vmatprep.subr.bf16.mxu0 0
        %1042 = vmatpush1.bf16.msra.mxu0 0
        %1043 = vmatprep.subr.bf16.mxu0 0
        %1044 = vmatpush1.bf16.msra.mxu0 0
        %1045 = vmatprep.subr.bf16.mxu0 0
        %1046 = vmatpush1.bf16.msra.mxu0 0
        %1047 = vmatprep.subr.bf16.mxu0 0
        %1048 = vmatpush1.bf16.msra.mxu0 0
        %1049 = vmatprep.subr.bf16.mxu0 0
        %1050 = vmatpush1.bf16.msra.mxu0 0
        %1051 = vmatprep.subr.bf16.mxu0 0
        %1052 = vmatpush1.bf16.msra.mxu0 0
        %1053 = vmatprep.subr.bf16.mxu0 0
        %1054 = vmatpush1.bf16.msra.mxu0 0
        %1055 = vmatprep.subr.bf16.mxu0 0
        %1056 = vmatpush1.bf16.msra.mxu0 0
        %1057 = vmatprep.subr.bf16.mxu0 0
        %1058 = vmatpush1.bf16.msra.mxu0 0
        %1059 = vmatprep.subr.bf16.mxu0 0
        %1060 = vmatpush1.bf16.msra.mxu0 0
        %1061 = vmatprep.subr.bf16.mxu0 0
        %1062 = vmatpush1.bf16.msra.mxu0 0
        %1063 = vmatprep.subr.bf16.mxu0 0
        %1064 = vmatpush1.bf16.msra.mxu0 0
        %1065 = vmatprep.subr.bf16.mxu0 0
        %1066 = vmatpush1.bf16.msra.mxu0 0
        %1067 = vmatprep.subr.bf16.mxu0 0
        %1068 = vmatpush1.bf16.msra.mxu0 0
        %1069 = vmatprep.mubr.bf16.mxu0 0
        %1070 = vmatmul.mubr.bf16.gmra.mrb[0].mxu0 %v1022
        %v1071 = vpop.f32.mrb[0].mxu0
        %v1072 = vadd.f32 0.0, %v1071
        %v1073 = vpop.f32.mrb[0].mxu0
        %v1074 = vpop.f32.mrb[0].mxu0
        %v1075 = vadd.f32 0.0, %v1074
        %v1076 = vpop.f32.mrb[0].mxu0
        %1077 = vmatprep.mubr.bf16.mxu0 0
        %1078 = vmatmul.mubr.bf16.gmra.mrb[0].mxu0 %v1025
        %v1079 = vpop.f32.mrb[0].mxu0
        %v1080 = vadd.f32 0.0, %v1079
        %v1081 = vpop.f32.mrb[0].mxu0
        %v1082 = vpop.f32.mrb[0].mxu0
        %v1083 = vadd.f32 0.0, %v1082
        %v1084 = vpop.f32.mrb[0].mxu0
        %1085 = vmatprep.mubr.bf16.mxu0 0
        %1086 = vmatmul.mubr.bf16.gmra.mrb[0].mxu0 %v1028
        %v1087 = vpop.f32.mrb[0].mxu0
        %v1088 = vadd.f32 0.0, %v1087
        %v1089 = vpop.f32.mrb[0].mxu0
        %v1090 = vpop.f32.mrb[0].mxu0
        %v1091 = vadd.f32 0.0, %v1090
        %v1092 = vpop.f32.mrb[0].mxu0
        %1093 = vmatprep.mubr.bf16.mxu0 0
        %1094 = vmatmul.mubr.bf16.gmra.mrb[0].mxu0 %v1031
        %v1095 = vpop.f32.mrb[0].mxu0
        %v1096 = vadd.f32 0.0, %v1095
        %v1097 = vpop.f32.mrb[0].mxu0
        %v1098 = vpop.f32.mrb[0].mxu0
        %v1099 = vadd.f32 0.0, %v1098
        %v1100 = vpop.f32.mrb[0].mxu0
        %1101 = vdwg.mxu0
        %v1103 = vsel %vm370, %v1002, 0
        %v1106 = vsel %vm370, %v1003, 0
        %v1109 = vsel %vm370, %v1004, 0
        %v1112 = vsel %vm370, %v1005, 0
        %v1115 = vsel %vm1033, %v1006, 0
        %1117 = vmatprep.subr.bf16.mxu0 0
        %1118 = vmatpush1.bf16.msra.mxu0 %v1115
        %1119 = vmatprep.subr.bf16.mxu0 0
        %1120 = vmatpush1.bf16.msra.mxu0 0
        %1121 = vmatprep.subr.bf16.mxu0 0
        %1122 = vmatpush1.bf16.msra.mxu0 0
        %1123 = vmatprep.subr.bf16.mxu0 0
        %1124 = vmatpush1.bf16.msra.mxu0 0
        %1125 = vmatprep.subr.bf16.mxu0 0
        %1126 = vmatpush1.bf16.msra.mxu0 0
        %1127 = vmatprep.subr.bf16.mxu0 0
        %1128 = vmatpush1.bf16.msra.mxu0 0
        %1129 = vmatprep.subr.bf16.mxu0 0
        %1130 = vmatpush1.bf16.msra.mxu0 0
        %1131 = vmatprep.subr.bf16.mxu0 0
        %1132 = vmatpush1.bf16.msra.mxu0 0
        %1133 = vmatprep.subr.bf16.mxu0 0
        %1134 = vmatpush1.bf16.msra.mxu0 0
        %1135 = vmatprep.subr.bf16.mxu0 0
        %1136 = vmatpush1.bf16.msra.mxu0 0
        %1137 = vmatprep.subr.bf16.mxu0 0
        %1138 = vmatpush1.bf16.msra.mxu0 0
        %1139 = vmatprep.subr.bf16.mxu0 0
        %1140 = vmatpush1.bf16.msra.mxu0 0
        %1141 = vmatprep.subr.bf16.mxu0 0
        %1142 = vmatpush1.bf16.msra.mxu0 0
        %1143 = vmatprep.subr.bf16.mxu0 0
        %1144 = vmatpush1.bf16.msra.mxu0 0
        %1145 = vmatprep.subr.bf16.mxu0 0
        %1146 = vmatpush1.bf16.msra.mxu0 0
        %1147 = vmatprep.subr.bf16.mxu0 0
        %1148 = vmatpush1.bf16.msra.mxu0 0
        %1149 = vmatprep.mubr.bf16.mxu0 0
        %1150 = vmatmul.mubr.bf16.gmra.mrb[0].mxu0 %v1103
        %v1151 = vpop.f32.mrb[0].mxu0
        %v1152 = vadd.f32 %v1072, %v1151
        %v1153 = vpop.f32.mrb[0].mxu0
        %v1154 = vpop.f32.mrb[0].mxu0
        %v1155 = vadd.f32 %v1075, %v1154
        %v1156 = vpop.f32.mrb[0].mxu0
        %1157 = vmatprep.mubr.bf16.mxu0 0
        %1158 = vmatmul.mubr.bf16.gmra.mrb[0].mxu0 %v1106
        %v1159 = vpop.f32.mrb[0].mxu0
        %v1160 = vadd.f32 %v1080, %v1159
        %v1161 = vpop.f32.mrb[0].mxu0
        %v1162 = vpop.f32.mrb[0].mxu0
        %v1163 = vadd.f32 %v1083, %v1162
        %v1164 = vpop.f32.mrb[0].mxu0
        %1165 = vmatprep.mubr.bf16.mxu0 0
        %1166 = vmatmul.mubr.bf16.gmra.mrb[0].mxu0 %v1109
        %v1167 = vpop.f32.mrb[0].mxu0
        %v1168 = vadd.f32 %v1088, %v1167
        %v1169 = vpop.f32.mrb[0].mxu0
        %v1170 = vpop.f32.mrb[0].mxu0
        %v1171 = vadd.f32 %v1091, %v1170
        %v1172 = vpop.f32.mrb[0].mxu0
        %1173 = vmatprep.mubr.bf16.mxu0 0
        %1174 = vmatmul.mubr.bf16.gmra.mrb[0].mxu0 %v1112
        %v1175 = vpop.f32.mrb[0].mxu0
        %v1176 = vadd.f32 %v1096, %v1175
        %v1177 = vpop.f32.mrb[0].mxu0
        %v1178 = vpop.f32.mrb[0].mxu0
        %v1179 = vadd.f32 %v1099, %v1178
        %v1180 = vpop.f32.mrb[0].mxu0
        %1181 = vdwg.mxu0
        %v1182 = vld [vmem:[#allocation2 + $0x1] sm:$0xff]
        %v1183 = vld [vmem:[#allocation2 + $0x11] sm:$0xff]
        %v1184 = vld [vmem:[#allocation2 + $0x21] sm:$0xff]
        %v1185 = vld [vmem:[#allocation2 + $0x31] sm:$0xff]
        %v1186 = vld [vmem:[#allocation2 + $0x41] sm:$0xff]
        %v1187 = vld [vmem:[#allocation2 + $0x51] sm:$0xff]
        %v1188 = vld [vmem:[#allocation2 + $0x61] sm:$0xff]
        %v1189 = vld [vmem:[#allocation2 + $0x71] sm:$0xff]
        %v1190 = vpack.c.bf16 %v1183, %v1182
        %v1191 = vpack.c.bf16 %v1185, %v1184
        %v1192 = vpack.c.bf16 %v1187, %v1186
        %v1193 = vpack.c.bf16 %v1189, %v1188
        %s1194 = scalar_lea.vmem %s3, 8
        %v1195 = vld [vmem:[%s1194] sm:$0xf]
        %v1197 = vsel %vm370, %v1190, 0
        %v1200 = vsel %vm370, %v1191, 0
        %v1203 = vsel %vm370, %v1192, 0
        %v1206 = vsel %vm370, %v1193, 0
        %v1209 = vsel %vm1033, %v1195, 0
        %1211 = vmatprep.subr.bf16.mxu0 0
        %1212 = vmatpush1.bf16.msra.mxu0 %v1209
        %1213 = vmatprep.subr.bf16.mxu0 0
        %1214 = vmatpush1.bf16.msra.mxu0 0
        %1215 = vmatprep.subr.bf16.mxu0 0
        %1216 = vmatpush1.bf16.msra.mxu0 0
        %1217 = vmatprep.subr.bf16.mxu0 0
        %1218 = vmatpush1.bf16.msra.mxu0 0
        %1219 = vmatprep.subr.bf16.mxu0 0
        %1220 = vmatpush1.bf16.msra.mxu0 0
        %1221 = vmatprep.subr.bf16.mxu0 0
        %1222 = vmatpush1.bf16.msra.mxu0 0
        %1223 = vmatprep.subr.bf16.mxu0 0
        %1224 = vmatpush1.bf16.msra.mxu0 0
        %1225 = vmatprep.subr.bf16.mxu0 0
        %1226 = vmatpush1.bf16.msra.mxu0 0
        %1227 = vmatprep.subr.bf16.mxu0 0
        %1228 = vmatpush1.bf16.msra.mxu0 0
        %1229 = vmatprep.subr.bf16.mxu0 0
        %1230 = vmatpush1.bf16.msra.mxu0 0
        %1231 = vmatprep.subr.bf16.mxu0 0
        %1232 = vmatpush1.bf16.msra.mxu0 0
        %1233 = vmatprep.subr.bf16.mxu0 0
        %1234 = vmatpush1.bf16.msra.mxu0 0
        %1235 = vmatprep.subr.bf16.mxu0 0
        %1236 = vmatpush1.bf16.msra.mxu0 0
        %1237 = vmatprep.subr.bf16.mxu0 0
        %1238 = vmatpush1.bf16.msra.mxu0 0
        %1239 = vmatprep.subr.bf16.mxu0 0
        %1240 = vmatpush1.bf16.msra.mxu0 0
        %1241 = vmatprep.subr.bf16.mxu0 0
        %1242 = vmatpush1.bf16.msra.mxu0 0
        %1243 = vmatprep.mubr.bf16.mxu0 0
        %1244 = vmatmul.mubr.bf16.gmra.mrb[0].mxu0 %v1197
        %v1245 = vpop.f32.mrb[0].mxu0
        %v1246 = vadd.f32 0.0, %v1245
        %v1247 = vpop.f32.mrb[0].mxu0
        %v1248 = vpop.f32.mrb[0].mxu0
        %v1249 = vadd.f32 0.0, %v1248
        %v1250 = vpop.f32.mrb[0].mxu0
        %1251 = vmatprep.mubr.bf16.mxu0 0
        %1252 = vmatmul.mubr.bf16.gmra.mrb[0].mxu0 %v1200
        %v1253 = vpop.f32.mrb[0].mxu0
        %v1254 = vadd.f32 0.0, %v1253
        %v1255 = vpop.f32.mrb[0].mxu0
        %v1256 = vpop.f32.mrb[0].mxu0
        %v1257 = vadd.f32 0.0, %v1256
        %v1258 = vpop.f32.mrb[0].mxu0
        %1259 = vmatprep.mubr.bf16.mxu0 0
        %1260 = vmatmul.mubr.bf16.gmra.mrb[0].mxu0 %v1203
        %v1261 = vpop.f32.mrb[0].mxu0
        %v1262 = vadd.f32 0.0, %v1261
        %v1263 = vpop.f32.mrb[0].mxu0
        %v1264 = vpop.f32.mrb[0].mxu0
        %v1265 = vadd.f32 0.0, %v1264
        %v1266 = vpop.f32.mrb[0].mxu0
        %1267 = vmatprep.mubr.bf16.mxu0 0
        %1268 = vmatmul.mubr.bf16.gmra.mrb[0].mxu0 %v1206
        %v1269 = vpop.f32.mrb[0].mxu0
        %v1270 = vadd.f32 0.0, %v1269
        %v1271 = vpop.f32.mrb[0].mxu0
        %v1272 = vpop.f32.mrb[0].mxu0
        %v1273 = vadd.f32 0.0, %v1272
        %v1274 = vpop.f32.mrb[0].mxu0
        %1275 = vdwg.mxu0
        %v1276 = vadd.f32 %v1152, %v1246
        %v1277 = vadd.f32 %v1155, %v1249
        %v1278 = vadd.f32 %v1160, %v1254
        %v1279 = vadd.f32 %v1163, %v1257
        %v1280 = vadd.f32 %v1168, %v1262
        %v1281 = vadd.f32 %v1171, %v1265
        %v1282 = vadd.f32 %v1176, %v1270
        %v1283 = vadd.f32 %v1179, %v1273
        %v1284 = vld [vmem:[#allocation4] sm:$0xff]
        %v1285 = vld [vmem:[#allocation4 + $0x10] sm:$0xff]
        %v1286 = vld [vmem:[#allocation4 + $0x20] sm:$0xff]
        %v1287 = vld [vmem:[#allocation4 + $0x30] sm:$0xff]
        %v1288 = vld [vmem:[#allocation4 + $0x40] sm:$0xff]
        %v1289 = vld [vmem:[#allocation4 + $0x50] sm:$0xff]
        %v1290 = vld [vmem:[#allocation4 + $0x60] sm:$0xff]
        %v1291 = vld [vmem:[#allocation4 + $0x70] sm:$0xff]
        %v1292 = vpack.c.bf16 %v1285, %v1284
        %v1293 = vpack.c.bf16 %v1287, %v1286
        %v1294 = vpack.c.bf16 %v1289, %v1288
        %v1295 = vpack.c.bf16 %v1291, %v1290
        %s1296 = scalar_lea.vmem %s3, 12
        %v1297 = vld [vmem:[%s1296] sm:$0xf]
        %v1299 = vsel %vm370, %v1292, 0
        %v1302 = vsel %vm370, %v1293, 0
        %v1305 = vsel %vm370, %v1294, 0
        %v1308 = vsel %vm370, %v1295, 0
        %v1311 = vsel %vm1033, %v1297, 0
        %1313 = vmatprep.subr.bf16.mxu0 0
        %1314 = vmatpush1.bf16.msra.mxu0 %v1311
        %1315 = vmatprep.subr.bf16.mxu0 0
        %1316 = vmatpush1.bf16.msra.mxu0 0
        %1317 = vmatprep.subr.bf16.mxu0 0
        %1318 = vmatpush1.bf16.msra.mxu0 0
        %1319 = vmatprep.subr.bf16.mxu0 0
        %1320 = vmatpush1.bf16.msra.mxu0 0
        %1321 = vmatprep.subr.bf16.mxu0 0
        %1322 = vmatpush1.bf16.msra.mxu0 0
        %1323 = vmatprep.subr.bf16.mxu0 0
        %1324 = vmatpush1.bf16.msra.mxu0 0
        %1325 = vmatprep.subr.bf16.mxu0 0
        %1326 = vmatpush1.bf16.msra.mxu0 0
        %1327 = vmatprep.subr.bf16.mxu0 0
        %1328 = vmatpush1.bf16.msra.mxu0 0
        %1329 = vmatprep.subr.bf16.mxu0 0
        %1330 = vmatpush1.bf16.msra.mxu0 0
        %1331 = vmatprep.subr.bf16.mxu0 0
        %1332 = vmatpush1.bf16.msra.mxu0 0
        %1333 = vmatprep.subr.bf16.mxu0 0
        %1334 = vmatpush1.bf16.msra.mxu0 0
        %1335 = vmatprep.subr.bf16.mxu0 0
        %1336 = vmatpush1.bf16.msra.mxu0 0
        %1337 = vmatprep.subr.bf16.mxu0 0
        %1338 = vmatpush1.bf16.msra.mxu0 0
        %1339 = vmatprep.subr.bf16.mxu0 0
        %1340 = vmatpush1.bf16.msra.mxu0 0
        %1341 = vmatprep.subr.bf16.mxu0 0
        %1342 = vmatpush1.bf16.msra.mxu0 0
        %1343 = vmatprep.subr.bf16.mxu0 0
        %1344 = vmatpush1.bf16.msra.mxu0 0
        %1345 = vmatprep.mubr.bf16.mxu0 0
        %1346 = vmatmul.mubr.bf16.gmra.mrb[0].mxu0 %v1299
        %v1347 = vpop.f32.mrb[0].mxu0
        %v1348 = vadd.f32 0.0, %v1347
        %v1349 = vpop.f32.mrb[0].mxu0
        %v1350 = vpop.f32.mrb[0].mxu0
        %v1351 = vadd.f32 0.0, %v1350
        %v1352 = vpop.f32.mrb[0].mxu0
        %1353 = vmatprep.mubr.bf16.mxu0 0
        %1354 = vmatmul.mubr.bf16.gmra.mrb[0].mxu0 %v1302
        %v1355 = vpop.f32.mrb[0].mxu0
        %v1356 = vadd.f32 0.0, %v1355
        %v1357 = vpop.f32.mrb[0].mxu0
        %v1358 = vpop.f32.mrb[0].mxu0
        %v1359 = vadd.f32 0.0, %v1358
        %v1360 = vpop.f32.mrb[0].mxu0
        %1361 = vmatprep.mubr.bf16.mxu0 0
        %1362 = vmatmul.mubr.bf16.gmra.mrb[0].mxu0 %v1305
        %v1363 = vpop.f32.mrb[0].mxu0
        %v1364 = vadd.f32 0.0, %v1363
        %v1365 = vpop.f32.mrb[0].mxu0
        %v1366 = vpop.f32.mrb[0].mxu0
        %v1367 = vadd.f32 0.0, %v1366
        %v1368 = vpop.f32.mrb[0].mxu0
        %1369 = vmatprep.mubr.bf16.mxu0 0
        %1370 = vmatmul.mubr.bf16.gmra.mrb[0].mxu0 %v1308
        %v1371 = vpop.f32.mrb[0].mxu0
        %v1372 = vadd.f32 0.0, %v1371
        %v1373 = vpop.f32.mrb[0].mxu0
        %v1374 = vpop.f32.mrb[0].mxu0
        %v1375 = vadd.f32 0.0, %v1374
        %v1376 = vpop.f32.mrb[0].mxu0
        %1377 = vdwg.mxu0
        %v1378 = vadd.f32 %v1276, %v1348
        %v1379 = vadd.f32 %v1277, %v1351
        %v1380 = vadd.f32 %v1278, %v1356
        %v1381 = vadd.f32 %v1279, %v1359
        %v1382 = vadd.f32 %v1280, %v1364
        %v1383 = vadd.f32 %v1281, %v1367
        %v1384 = vadd.f32 %v1282, %v1372
        %v1385 = vadd.f32 %v1283, %v1375
        %v1386 = vld [vmem:[#allocation5] sm:$0xff]
        %v1387 = vld [vmem:[#allocation5 + $0x10] sm:$0xff]
        %v1388 = vld [vmem:[#allocation5 + $0x20] sm:$0xff]
        %v1389 = vld [vmem:[#allocation5 + $0x30] sm:$0xff]
        %v1390 = vld [vmem:[#allocation5 + $0x40] sm:$0xff]
        %v1391 = vld [vmem:[#allocation5 + $0x50] sm:$0xff]
        %v1392 = vld [vmem:[#allocation5 + $0x60] sm:$0xff]
        %v1393 = vld [vmem:[#allocation5 + $0x70] sm:$0xff]
        %v1394 = vpack.c.bf16 %v1387, %v1386
        %v1395 = vpack.c.bf16 %v1389, %v1388
        %v1396 = vpack.c.bf16 %v1391, %v1390
        %v1397 = vpack.c.bf16 %v1393, %v1392
        %s1398 = scalar_lea.vmem %s3, 16
        %v1399 = vld [vmem:[%s1398] sm:$0xf]
        %v1401 = vsel %vm370, %v1394, 0
        %v1404 = vsel %vm370, %v1395, 0
        %v1407 = vsel %vm370, %v1396, 0
        %v1410 = vsel %vm370, %v1397, 0
        %v1413 = vsel %vm1033, %v1399, 0
        %1415 = vmatprep.subr.bf16.mxu0 0
        %1416 = vmatpush1.bf16.msra.mxu0 %v1413
        %1417 = vmatprep.subr.bf16.mxu0 0
        %1418 = vmatpush1.bf16.msra.mxu0 0
        %1419 = vmatprep.subr.bf16.mxu0 0
        %1420 = vmatpush1.bf16.msra.mxu0 0
        %1421 = vmatprep.subr.bf16.mxu0 0
        %1422 = vmatpush1.bf16.msra.mxu0 0
        %1423 = vmatprep.subr.bf16.mxu0 0
        %1424 = vmatpush1.bf16.msra.mxu0 0
        %1425 = vmatprep.subr.bf16.mxu0 0
        %1426 = vmatpush1.bf16.msra.mxu0 0
        %1427 = vmatprep.subr.bf16.mxu0 0
        %1428 = vmatpush1.bf16.msra.mxu0 0
        %1429 = vmatprep.subr.bf16.mxu0 0
        %1430 = vmatpush1.bf16.msra.mxu0 0
        %1431 = vmatprep.subr.bf16.mxu0 0
        %1432 = vmatpush1.bf16.msra.mxu0 0
        %1433 = vmatprep.subr.bf16.mxu0 0
        %1434 = vmatpush1.bf16.msra.mxu0 0
        %1435 = vmatprep.subr.bf16.mxu0 0
        %1436 = vmatpush1.bf16.msra.mxu0 0
        %1437 = vmatprep.subr.bf16.mxu0 0
        %1438 = vmatpush1.bf16.msra.mxu0 0
        %1439 = vmatprep.subr.bf16.mxu0 0
        %1440 = vmatpush1.bf16.msra.mxu0 0
        %1441 = vmatprep.subr.bf16.mxu0 0
        %1442 = vmatpush1.bf16.msra.mxu0 0
        %1443 = vmatprep.subr.bf16.mxu0 0
        %1444 = vmatpush1.bf16.msra.mxu0 0
        %1445 = vmatprep.subr.bf16.mxu0 0
        %1446 = vmatpush1.bf16.msra.mxu0 0
        %1447 = vmatprep.mubr.bf16.mxu0 0
        %1448 = vmatmul.mubr.bf16.gmra.mrb[0].mxu0 %v1401
        %v1449 = vpop.f32.mrb[0].mxu0
        %v1450 = vadd.f32 0.0, %v1449
        %v1451 = vpop.f32.mrb[0].mxu0
        %v1452 = vpop.f32.mrb[0].mxu0
        %v1453 = vadd.f32 0.0, %v1452
        %v1454 = vpop.f32.mrb[0].mxu0
        %1455 = vmatprep.mubr.bf16.mxu0 0
        %1456 = vmatmul.mubr.bf16.gmra.mrb[0].mxu0 %v1404
        %v1457 = vpop.f32.mrb[0].mxu0
        %v1458 = vadd.f32 0.0, %v1457
        %v1459 = vpop.f32.mrb[0].mxu0
        %v1460 = vpop.f32.mrb[0].mxu0
        %v1461 = vadd.f32 0.0, %v1460
        %v1462 = vpop.f32.mrb[0].mxu0
        %1463 = vmatprep.mubr.bf16.mxu0 0
        %1464 = vmatmul.mubr.bf16.gmra.mrb[0].mxu0 %v1407
        %v1465 = vpop.f32.mrb[0].mxu0
        %v1466 = vadd.f32 0.0, %v1465
        %v1467 = vpop.f32.mrb[0].mxu0
        %v1468 = vpop.f32.mrb[0].mxu0
        %v1469 = vadd.f32 0.0, %v1468
        %v1470 = vpop.f32.mrb[0].mxu0
        %1471 = vmatprep.mubr.bf16.mxu0 0
        %1472 = vmatmul.mubr.bf16.gmra.mrb[0].mxu0 %v1410
        %v1473 = vpop.f32.mrb[0].mxu0
        %v1474 = vadd.f32 0.0, %v1473
        %v1475 = vpop.f32.mrb[0].mxu0
        %v1476 = vpop.f32.mrb[0].mxu0
        %v1477 = vadd.f32 0.0, %v1476
        %v1478 = vpop.f32.mrb[0].mxu0
        %1479 = vdwg.mxu0
        %v1480 = vadd.f32 %v1378, %v1450
        %v1481 = vadd.f32 %v1379, %v1453
        %v1482 = vadd.f32 %v1380, %v1458
        %v1483 = vadd.f32 %v1381, %v1461
        %v1484 = vadd.f32 %v1382, %v1466
        %v1485 = vadd.f32 %v1383, %v1469
        %v1486 = vadd.f32 %v1384, %v1474
        %v1487 = vadd.f32 %v1385, %v1477
        %v1488 = vld [vmem:[#allocation4 + $0x1] sm:$0xff]
        %v1489 = vld [vmem:[#allocation4 + $0x11] sm:$0xff]
        %v1490 = vld [vmem:[#allocation4 + $0x21] sm:$0xff]
        %v1491 = vld [vmem:[#allocation4 + $0x31] sm:$0xff]
        %v1492 = vld [vmem:[#allocation4 + $0x41] sm:$0xff]
        %v1493 = vld [vmem:[#allocation4 + $0x51] sm:$0xff]
        %v1494 = vld [vmem:[#allocation4 + $0x61] sm:$0xff]
        %v1495 = vld [vmem:[#allocation4 + $0x71] sm:$0xff]
        %v1496 = vpack.c.bf16 %v1489, %v1488
        %v1497 = vpack.c.bf16 %v1491, %v1490
        %v1498 = vpack.c.bf16 %v1493, %v1492
        %v1499 = vpack.c.bf16 %v1495, %v1494
        %s1500 = scalar_lea.vmem %s3, 20
        %v1501 = vld [vmem:[%s1500] sm:$0xf]
        %v1503 = vsel %vm370, %v1496, 0
        %v1506 = vsel %vm370, %v1497, 0
        %v1509 = vsel %vm370, %v1498, 0
        %v1512 = vsel %vm370, %v1499, 0
        %v1515 = vsel %vm1033, %v1501, 0
        %1517 = vmatprep.subr.bf16.mxu0 0
        %1518 = vmatpush1.bf16.msra.mxu0 %v1515
        %1519 = vmatprep.subr.bf16.mxu0 0
        %1520 = vmatpush1.bf16.msra.mxu0 0
        %1521 = vmatprep.subr.bf16.mxu0 0
        %1522 = vmatpush1.bf16.msra.mxu0 0
        %1523 = vmatprep.subr.bf16.mxu0 0
        %1524 = vmatpush1.bf16.msra.mxu0 0
        %1525 = vmatprep.subr.bf16.mxu0 0
        %1526 = vmatpush1.bf16.msra.mxu0 0
        %1527 = vmatprep.subr.bf16.mxu0 0
        %1528 = vmatpush1.bf16.msra.mxu0 0
        %1529 = vmatprep.subr.bf16.mxu0 0
        %1530 = vmatpush1.bf16.msra.mxu0 0
        %1531 = vmatprep.subr.bf16.mxu0 0
        %1532 = vmatpush1.bf16.msra.mxu0 0
        %1533 = vmatprep.subr.bf16.mxu0 0
        %1534 = vmatpush1.bf16.msra.mxu0 0
        %1535 = vmatprep.subr.bf16.mxu0 0
        %1536 = vmatpush1.bf16.msra.mxu0 0
        %1537 = vmatprep.subr.bf16.mxu0 0
        %1538 = vmatpush1.bf16.msra.mxu0 0
        %1539 = vmatprep.subr.bf16.mxu0 0
        %1540 = vmatpush1.bf16.msra.mxu0 0
        %1541 = vmatprep.subr.bf16.mxu0 0
        %1542 = vmatpush1.bf16.msra.mxu0 0
        %1543 = vmatprep.subr.bf16.mxu0 0
        %1544 = vmatpush1.bf16.msra.mxu0 0
        %1545 = vmatprep.subr.bf16.mxu0 0
        %1546 = vmatpush1.bf16.msra.mxu0 0
        %1547 = vmatprep.subr.bf16.mxu0 0
        %1548 = vmatpush1.bf16.msra.mxu0 0
        %1549 = vmatprep.mubr.bf16.mxu0 0
        %1550 = vmatmul.mubr.bf16.gmra.mrb[0].mxu0 %v1503
        %v1551 = vpop.f32.mrb[0].mxu0
        %v1552 = vadd.f32 0.0, %v1551
        %v1553 = vpop.f32.mrb[0].mxu0
        %v1554 = vpop.f32.mrb[0].mxu0
        %v1555 = vadd.f32 0.0, %v1554
        %v1556 = vpop.f32.mrb[0].mxu0
        %1557 = vmatprep.mubr.bf16.mxu0 0
        %1558 = vmatmul.mubr.bf16.gmra.mrb[0].mxu0 %v1506
        %v1559 = vpop.f32.mrb[0].mxu0
        %v1560 = vadd.f32 0.0, %v1559
        %v1561 = vpop.f32.mrb[0].mxu0
        %v1562 = vpop.f32.mrb[0].mxu0
        %v1563 = vadd.f32 0.0, %v1562
        %v1564 = vpop.f32.mrb[0].mxu0
        %1565 = vmatprep.mubr.bf16.mxu0 0
        %1566 = vmatmul.mubr.bf16.gmra.mrb[0].mxu0 %v1509
        %v1567 = vpop.f32.mrb[0].mxu0
        %v1568 = vadd.f32 0.0, %v1567
        %v1569 = vpop.f32.mrb[0].mxu0
        %v1570 = vpop.f32.mrb[0].mxu0
        %v1571 = vadd.f32 0.0, %v1570
        %v1572 = vpop.f32.mrb[0].mxu0
        %1573 = vmatprep.mubr.bf16.mxu0 0
        %1574 = vmatmul.mubr.bf16.gmra.mrb[0].mxu0 %v1512
        %v1575 = vpop.f32.mrb[0].mxu0
        %v1576 = vadd.f32 0.0, %v1575
        %v1577 = vpop.f32.mrb[0].mxu0
        %v1578 = vpop.f32.mrb[0].mxu0
        %v1579 = vadd.f32 0.0, %v1578
        %v1580 = vpop.f32.mrb[0].mxu0
        %1581 = vdwg.mxu0
        %v1582 = vadd.f32 %v1480, %v1552
        %v1583 = vadd.f32 %v1481, %v1555
        %v1584 = vadd.f32 %v1482, %v1560
        %v1585 = vadd.f32 %v1483, %v1563
        %v1586 = vadd.f32 %v1484, %v1568
        %v1587 = vadd.f32 %v1485, %v1571
        %v1588 = vadd.f32 %v1486, %v1576
        %v1589 = vadd.f32 %v1487, %v1579
        %v1590 = vld [vmem:[%s520] sm:$0xff]
        %v1591 = vld [vmem:[%s520 + $0x10] sm:$0xff]
        %v1592 = vld [vmem:[%s520 + $0x20] sm:$0xff]
        %v1593 = vld [vmem:[%s520 + $0x30] sm:$0xff]
        %v1594 = vld [vmem:[%s520 + $0x40] sm:$0xff]
        %v1595 = vld [vmem:[%s520 + $0x50] sm:$0xff]
        %v1596 = vld [vmem:[%s520 + $0x60] sm:$0xff]
        %v1597 = vld [vmem:[%s520 + $0x70] sm:$0xff]
        %v1598 = vpack.c.bf16 %v1591, %v1590
        %v1599 = vpack.c.bf16 %v1593, %v1592
        %v1600 = vpack.c.bf16 %v1595, %v1594
        %v1601 = vpack.c.bf16 %v1597, %v1596
        %s1602 = scalar_lea.vmem %s3, 24
        %v1603 = vld [vmem:[%s1602] sm:$0xf]
        %v1605 = vsel %vm370, %v1598, 0
        %v1608 = vsel %vm370, %v1599, 0
        %v1611 = vsel %vm370, %v1600, 0
        %v1614 = vsel %vm370, %v1601, 0
        %v1617 = vsel %vm1033, %v1603, 0
        %1619 = vmatprep.subr.bf16.mxu0 0
        %1620 = vmatpush1.bf16.msra.mxu0 %v1617
        %1621 = vmatprep.subr.bf16.mxu0 0
        %1622 = vmatpush1.bf16.msra.mxu0 0
        %1623 = vmatprep.subr.bf16.mxu0 0
        %1624 = vmatpush1.bf16.msra.mxu0 0
        %1625 = vmatprep.subr.bf16.mxu0 0
        %1626 = vmatpush1.bf16.msra.mxu0 0
        %1627 = vmatprep.subr.bf16.mxu0 0
        %1628 = vmatpush1.bf16.msra.mxu0 0
        %1629 = vmatprep.subr.bf16.mxu0 0
        %1630 = vmatpush1.bf16.msra.mxu0 0
        %1631 = vmatprep.subr.bf16.mxu0 0
        %1632 = vmatpush1.bf16.msra.mxu0 0
        %1633 = vmatprep.subr.bf16.mxu0 0
        %1634 = vmatpush1.bf16.msra.mxu0 0
        %1635 = vmatprep.subr.bf16.mxu0 0
        %1636 = vmatpush1.bf16.msra.mxu0 0
        %1637 = vmatprep.subr.bf16.mxu0 0
        %1638 = vmatpush1.bf16.msra.mxu0 0
        %1639 = vmatprep.subr.bf16.mxu0 0
        %1640 = vmatpush1.bf16.msra.mxu0 0
        %1641 = vmatprep.subr.bf16.mxu0 0
        %1642 = vmatpush1.bf16.msra.mxu0 0
        %1643 = vmatprep.subr.bf16.mxu0 0
        %1644 = vmatpush1.bf16.msra.mxu0 0
        %1645 = vmatprep.subr.bf16.mxu0 0
        %1646 = vmatpush1.bf16.msra.mxu0 0
        %1647 = vmatprep.subr.bf16.mxu0 0
        %1648 = vmatpush1.bf16.msra.mxu0 0
        %1649 = vmatprep.subr.bf16.mxu0 0
        %1650 = vmatpush1.bf16.msra.mxu0 0
        %1651 = vmatprep.mubr.bf16.mxu0 0
        %1652 = vmatmul.mubr.bf16.gmra.mrb[0].mxu0 %v1605
        %v1653 = vpop.f32.mrb[0].mxu0
        %v1654 = vadd.f32 0.0, %v1653
        %v1655 = vpop.f32.mrb[0].mxu0
        %v1656 = vpop.f32.mrb[0].mxu0
        %v1657 = vadd.f32 0.0, %v1656
        %v1658 = vpop.f32.mrb[0].mxu0
        %1659 = vmatprep.mubr.bf16.mxu0 0
        %1660 = vmatmul.mubr.bf16.gmra.mrb[0].mxu0 %v1608
        %v1661 = vpop.f32.mrb[0].mxu0
        %v1662 = vadd.f32 0.0, %v1661
        %v1663 = vpop.f32.mrb[0].mxu0
        %v1664 = vpop.f32.mrb[0].mxu0
        %v1665 = vadd.f32 0.0, %v1664
        %v1666 = vpop.f32.mrb[0].mxu0
        %1667 = vmatprep.mubr.bf16.mxu0 0
        %1668 = vmatmul.mubr.bf16.gmra.mrb[0].mxu0 %v1611
        %v1669 = vpop.f32.mrb[0].mxu0
        %v1670 = vadd.f32 0.0, %v1669
        %v1671 = vpop.f32.mrb[0].mxu0
        %v1672 = vpop.f32.mrb[0].mxu0
        %v1673 = vadd.f32 0.0, %v1672
        %v1674 = vpop.f32.mrb[0].mxu0
        %1675 = vmatprep.mubr.bf16.mxu0 0
        %1676 = vmatmul.mubr.bf16.gmra.mrb[0].mxu0 %v1614
        %v1677 = vpop.f32.mrb[0].mxu0
        %v1678 = vadd.f32 0.0, %v1677
        %v1679 = vpop.f32.mrb[0].mxu0
        %v1680 = vpop.f32.mrb[0].mxu0
        %v1681 = vadd.f32 0.0, %v1680
        %v1682 = vpop.f32.mrb[0].mxu0
        %1683 = vdwg.mxu0
        %v1684 = vadd.f32 %v1582, %v1654
        %v1685 = vadd.f32 %v1583, %v1657
        %v1686 = vadd.f32 %v1584, %v1662
        %v1687 = vadd.f32 %v1585, %v1665
        %v1688 = vadd.f32 %v1586, %v1670
        %v1689 = vadd.f32 %v1587, %v1673
        %v1690 = vadd.f32 %v1588, %v1678
        %v1691 = vadd.f32 %v1589, %v1681
        %v1692 = vld [vmem:[%s676] sm:$0xff]
        %v1693 = vld [vmem:[%s676 + $0x10] sm:$0xff]
        %v1694 = vld [vmem:[%s676 + $0x20] sm:$0xff]
        %v1695 = vld [vmem:[%s676 + $0x30] sm:$0xff]
        %v1696 = vld [vmem:[%s676 + $0x40] sm:$0xff]
        %v1697 = vld [vmem:[%s676 + $0x50] sm:$0xff]
        %v1698 = vld [vmem:[%s676 + $0x60] sm:$0xff]
        %v1699 = vld [vmem:[%s676 + $0x70] sm:$0xff]
        %v1700 = vpack.c.bf16 %v1693, %v1692
        %v1701 = vpack.c.bf16 %v1695, %v1694
        %v1702 = vpack.c.bf16 %v1697, %v1696
        %v1703 = vpack.c.bf16 %v1699, %v1698
        %s1704 = scalar_lea.vmem %s3, 28
        %v1705 = vld [vmem:[%s1704] sm:$0xf]
        %v1707 = vsel %vm370, %v1700, 0
        %v1710 = vsel %vm370, %v1701, 0
        %v1713 = vsel %vm370, %v1702, 0
        %v1716 = vsel %vm370, %v1703, 0
        %v1719 = vsel %vm1033, %v1705, 0
        %1721 = vmatprep.subr.bf16.mxu0 0
        %1722 = vmatpush1.bf16.msra.mxu0 %v1719
        %1723 = vmatprep.subr.bf16.mxu0 0
        %1724 = vmatpush1.bf16.msra.mxu0 0
        %1725 = vmatprep.subr.bf16.mxu0 0
        %1726 = vmatpush1.bf16.msra.mxu0 0
        %1727 = vmatprep.subr.bf16.mxu0 0
        %1728 = vmatpush1.bf16.msra.mxu0 0
        %1729 = vmatprep.subr.bf16.mxu0 0
        %1730 = vmatpush1.bf16.msra.mxu0 0
        %1731 = vmatprep.subr.bf16.mxu0 0
        %1732 = vmatpush1.bf16.msra.mxu0 0
        %1733 = vmatprep.subr.bf16.mxu0 0
        %1734 = vmatpush1.bf16.msra.mxu0 0
        %1735 = vmatprep.subr.bf16.mxu0 0
        %1736 = vmatpush1.bf16.msra.mxu0 0
        %1737 = vmatprep.subr.bf16.mxu0 0
        %1738 = vmatpush1.bf16.msra.mxu0 0
        %1739 = vmatprep.subr.bf16.mxu0 0
        %1740 = vmatpush1.bf16.msra.mxu0 0
        %1741 = vmatprep.subr.bf16.mxu0 0
        %1742 = vmatpush1.bf16.msra.mxu0 0
        %1743 = vmatprep.subr.bf16.mxu0 0
        %1744 = vmatpush1.bf16.msra.mxu0 0
        %1745 = vmatprep.subr.bf16.mxu0 0
        %1746 = vmatpush1.bf16.msra.mxu0 0
        %1747 = vmatprep.subr.bf16.mxu0 0
        %1748 = vmatpush1.bf16.msra.mxu0 0
        %1749 = vmatprep.subr.bf16.mxu0 0
        %1750 = vmatpush1.bf16.msra.mxu0 0
        %1751 = vmatprep.subr.bf16.mxu0 0
        %1752 = vmatpush1.bf16.msra.mxu0 0
        %1753 = vmatprep.mubr.bf16.mxu0 0
        %1754 = vmatmul.mubr.bf16.gmra.mrb[0].mxu0 %v1707
        %v1755 = vpop.f32.mrb[0].mxu0
        %v1756 = vadd.f32 0.0, %v1755
        %v1757 = vpop.f32.mrb[0].mxu0
        %v1758 = vpop.f32.mrb[0].mxu0
        %v1759 = vadd.f32 0.0, %v1758
        %v1760 = vpop.f32.mrb[0].mxu0
        %1761 = vmatprep.mubr.bf16.mxu0 0
        %1762 = vmatmul.mubr.bf16.gmra.mrb[0].mxu0 %v1710
        %v1763 = vpop.f32.mrb[0].mxu0
        %v1764 = vadd.f32 0.0, %v1763
        %v1765 = vpop.f32.mrb[0].mxu0
        %v1766 = vpop.f32.mrb[0].mxu0
        %v1767 = vadd.f32 0.0, %v1766
        %v1768 = vpop.f32.mrb[0].mxu0
        %1769 = vmatprep.mubr.bf16.mxu0 0
        %1770 = vmatmul.mubr.bf16.gmra.mrb[0].mxu0 %v1713
        %v1771 = vpop.f32.mrb[0].mxu0
        %v1772 = vadd.f32 0.0, %v1771
        %v1773 = vpop.f32.mrb[0].mxu0
        %v1774 = vpop.f32.mrb[0].mxu0
        %v1775 = vadd.f32 0.0, %v1774
        %v1776 = vpop.f32.mrb[0].mxu0
        %1777 = vmatprep.mubr.bf16.mxu0 0
        %1778 = vmatmul.mubr.bf16.gmra.mrb[0].mxu0 %v1716
        %v1779 = vpop.f32.mrb[0].mxu0
        %v1780 = vadd.f32 0.0, %v1779
        %v1781 = vpop.f32.mrb[0].mxu0
        %v1782 = vpop.f32.mrb[0].mxu0
        %v1783 = vadd.f32 0.0, %v1782
        %v1784 = vpop.f32.mrb[0].mxu0
        %1785 = vdwg.mxu0
        %v1786 = vadd.f32 %v1684, %v1756
        %v1787 = vadd.f32 %v1685, %v1759
        %v1788 = vadd.f32 %v1686, %v1764
        %v1789 = vadd.f32 %v1687, %v1767
        %v1790 = vadd.f32 %v1688, %v1772
        %v1791 = vadd.f32 %v1689, %v1775
        %v1792 = vadd.f32 %v1690, %v1780
        %v1793 = vadd.f32 %v1691, %v1783
        %v1794 = vld [vmem:[%s520 + $0x1] sm:$0xff]
        %v1795 = vld [vmem:[%s520 + $0x11] sm:$0xff]
        %v1796 = vld [vmem:[%s520 + $0x21] sm:$0xff]
        %v1797 = vld [vmem:[%s520 + $0x31] sm:$0xff]
        %v1798 = vld [vmem:[%s520 + $0x41] sm:$0xff]
        %v1799 = vld [vmem:[%s520 + $0x51] sm:$0xff]
        %v1800 = vld [vmem:[%s520 + $0x61] sm:$0xff]
        %v1801 = vld [vmem:[%s520 + $0x71] sm:$0xff]
        %v1802 = vpack.c.bf16 %v1795, %v1794
        %v1803 = vpack.c.bf16 %v1797, %v1796
        %v1804 = vpack.c.bf16 %v1799, %v1798
        %v1805 = vpack.c.bf16 %v1801, %v1800
        %s1806 = scalar_lea.vmem %s3, 32
        %v1807 = vld [vmem:[%s1806] sm:$0xf]
        %v1809 = vsel %vm370, %v1802, 0
        %v1812 = vsel %vm370, %v1803, 0
        %v1815 = vsel %vm370, %v1804, 0
        %v1818 = vsel %vm370, %v1805, 0
        %v1821 = vsel %vm1033, %v1807, 0
        %1823 = vmatprep.subr.bf16.mxu0 0
        %1824 = vmatpush1.bf16.msra.mxu0 %v1821
        %1825 = vmatprep.subr.bf16.mxu0 0
        %1826 = vmatpush1.bf16.msra.mxu0 0
        %1827 = vmatprep.subr.bf16.mxu0 0
        %1828 = vmatpush1.bf16.msra.mxu0 0
        %1829 = vmatprep.subr.bf16.mxu0 0
        %1830 = vmatpush1.bf16.msra.mxu0 0
        %1831 = vmatprep.subr.bf16.mxu0 0
        %1832 = vmatpush1.bf16.msra.mxu0 0
        %1833 = vmatprep.subr.bf16.mxu0 0
        %1834 = vmatpush1.bf16.msra.mxu0 0
        %1835 = vmatprep.subr.bf16.mxu0 0
        %1836 = vmatpush1.bf16.msra.mxu0 0
        %1837 = vmatprep.subr.bf16.mxu0 0
        %1838 = vmatpush1.bf16.msra.mxu0 0
        %1839 = vmatprep.subr.bf16.mxu0 0
        %1840 = vmatpush1.bf16.msra.mxu0 0
        %1841 = vmatprep.subr.bf16.mxu0 0
        %1842 = vmatpush1.bf16.msra.mxu0 0
        %1843 = vmatprep.subr.bf16.mxu0 0
        %1844 = vmatpush1.bf16.msra.mxu0 0
        %1845 = vmatprep.subr.bf16.mxu0 0
        %1846 = vmatpush1.bf16.msra.mxu0 0
        %1847 = vmatprep.subr.bf16.mxu0 0
        %1848 = vmatpush1.bf16.msra.mxu0 0
        %1849 = vmatprep.subr.bf16.mxu0 0
        %1850 = vmatpush1.bf16.msra.mxu0 0
        %1851 = vmatprep.subr.bf16.mxu0 0
        %1852 = vmatpush1.bf16.msra.mxu0 0
        %1853 = vmatprep.subr.bf16.mxu0 0
        %1854 = vmatpush1.bf16.msra.mxu0 0
        %1855 = vmatprep.mubr.bf16.mxu0 0
        %1856 = vmatmul.mubr.bf16.gmra.mrb[0].mxu0 %v1809
        %v1857 = vpop.f32.mrb[0].mxu0
        %v1858 = vadd.f32 0.0, %v1857
        %v1859 = vpop.f32.mrb[0].mxu0
        %v1860 = vpop.f32.mrb[0].mxu0
        %v1861 = vadd.f32 0.0, %v1860
        %v1862 = vpop.f32.mrb[0].mxu0
        %1863 = vmatprep.mubr.bf16.mxu0 0
        %1864 = vmatmul.mubr.bf16.gmra.mrb[0].mxu0 %v1812
        %v1865 = vpop.f32.mrb[0].mxu0
        %v1866 = vadd.f32 0.0, %v1865
        %v1867 = vpop.f32.mrb[0].mxu0
        %v1868 = vpop.f32.mrb[0].mxu0
        %v1869 = vadd.f32 0.0, %v1868
        %v1870 = vpop.f32.mrb[0].mxu0
        %1871 = vmatprep.mubr.bf16.mxu0 0
        %1872 = vmatmul.mubr.bf16.gmra.mrb[0].mxu0 %v1815
        %v1873 = vpop.f32.mrb[0].mxu0
        %v1874 = vadd.f32 0.0, %v1873
        %v1875 = vpop.f32.mrb[0].mxu0
        %v1876 = vpop.f32.mrb[0].mxu0
        %v1877 = vadd.f32 0.0, %v1876
        %v1878 = vpop.f32.mrb[0].mxu0
        %1879 = vmatprep.mubr.bf16.mxu0 0
        %1880 = vmatmul.mubr.bf16.gmra.mrb[0].mxu0 %v1818
        %v1881 = vpop.f32.mrb[0].mxu0
        %v1882 = vadd.f32 0.0, %v1881
        %v1883 = vpop.f32.mrb[0].mxu0
        %v1884 = vpop.f32.mrb[0].mxu0
        %v1885 = vadd.f32 0.0, %v1884
        %v1886 = vpop.f32.mrb[0].mxu0
        %1887 = vdwg.mxu0
        %v1888 = vadd.f32 %v1786, %v1858
        %v1889 = vadd.f32 %v1787, %v1861
        %v1890 = vadd.f32 %v1788, %v1866
        %v1891 = vadd.f32 %v1789, %v1869
        %v1892 = vadd.f32 %v1790, %v1874
        %v1893 = vadd.f32 %v1791, %v1877
        %v1894 = vadd.f32 %v1792, %v1882
        %v1895 = vadd.f32 %v1793, %v1885
        %v1896 = vld [vmem:[%s4] sm:$0x1]
        %v1898 = vlaneseq
        %v1899 = vshrl.u32 %v1898, 7
        %v1900 = vsub.s32 0, %v1899
        %v1901 = vrot.slane %v1896, %v1900
        %v1903 = vadd.f32 %v1888, %v1901
        %v1904 = vadd.f32 %v1889, %v1901
        %v1905 = vadd.f32 %v1890, %v1901
        %v1906 = vadd.f32 %v1891, %v1901
        %v1907 = vadd.f32 %v1892, %v1901
        %v1908 = vadd.f32 %v1893, %v1901
        %v1909 = vadd.f32 %v1894, %v1901
        %v1910 = vadd.f32 %v1895, %v1901
        %v1911 = vmax.f32 %v1903, 0.0
        %v1912 = vmax.f32 %v1904, 0.0
        %v1913 = vmax.f32 %v1905, 0.0
        %v1914 = vmax.f32 %v1906, 0.0
        %v1915 = vmax.f32 %v1907, 0.0
        %v1916 = vmax.f32 %v1908, 0.0
        %v1917 = vmax.f32 %v1909, 0.0
        %v1918 = vmax.f32 %v1910, 0.0
        %v1919 = vpack.c.bf16 %v1912, %v1911
        %v1920 = vpack.c.bf16 %v1914, %v1913
        %v1921 = vpack.c.bf16 %v1916, %v1915
        %v1922 = vpack.c.bf16 %v1918, %v1917
        %v1923 = vld [vmem:[%s368] sm:$0xf]
        %v1924 = vld [vmem:[%s368 + $0x4] sm:$0xf]
        %v1925 = vld [vmem:[%s368 + $0x8] sm:$0xf]
        %v1926 = vld [vmem:[%s368 + $0xc] sm:$0xf]
        %v1927 = vld [vmem:[%s368 + $0x10] sm:$0xf]
        %v1928 = vld [vmem:[%s368 + $0x14] sm:$0xf]
        %v1929 = vld [vmem:[%s368 + $0x18] sm:$0xf]
        %v1930 = vld [vmem:[%s368 + $0x1c] sm:$0xf]
        %v1931 = vld [vmem:[%s7] sm:$0xf]
        %v1932 = vld [vmem:[%s7 + $0x4] sm:$0xf]
        %v1933 = vld [vmem:[%s8] sm:$0x1]
        %v1935 = vlaneseq
        %v1936 = vshrl.u32 %v1935, 7
        %v1937 = vsub.s32 0, %v1936
        %v1938 = vrot.slane %v1933, %v1937
        %v1948 = vunpack.c.l.b16 %v1923
        %v1949 = vunpack.c.l.b16 %v1924
        %v1950 = vunpack.c.l.b16 %v1925
        %v1951 = vunpack.c.l.b16 %v1926
        %v1952 = vunpack.c.l.b16 %v1927
        %v1953 = vunpack.c.l.b16 %v1928
        %v1954 = vunpack.c.l.b16 %v1929
        %v1955 = vunpack.c.l.b16 %v1930
        %v1956 = vpack.c.b16 %v1949, %v1948
        %v1957 = vpack.c.b16 %v1951, %v1950
        %v1958 = vpack.c.b16 %v1953, %v1952
        %v1959 = vpack.c.b16 %v1955, %v1954
        %v1962 = vunpack.c.l.b16 %v1931
        %v1963 = vunpack.c.l.b16 %v1932
        %v1964 = vpack.c.b16 %v1963, %v1962
        %v1967 = vsel %vm434, %v1956, 0
        %v1970 = vsel %vm434, %v1957, 0
        %v1973 = vsel %vm434, %v1958, 0
        %v1976 = vsel %vm434, %v1959, 0
        %1978 = vmatprep.subr.bf16.mxu0 0
        %1979 = vmatpush1.bf16.msra.mxu0 %v1964
        %1980 = vmatprep.subr.bf16.mxu0 0
        %1981 = vmatpush1.bf16.msra.mxu0 0
        %1982 = vmatprep.subr.bf16.mxu0 0
        %1983 = vmatpush1.bf16.msra.mxu0 0
        %1984 = vmatprep.subr.bf16.mxu0 0
        %1985 = vmatpush1.bf16.msra.mxu0 0
        %1986 = vmatprep.subr.bf16.mxu0 0
        %1987 = vmatpush1.bf16.msra.mxu0 0
        %1988 = vmatprep.subr.bf16.mxu0 0
        %1989 = vmatpush1.bf16.msra.mxu0 0
        %1990 = vmatprep.subr.bf16.mxu0 0
        %1991 = vmatpush1.bf16.msra.mxu0 0
        %1992 = vmatprep.subr.bf16.mxu0 0
        %1993 = vmatpush1.bf16.msra.mxu0 0
        %1994 = vmatprep.subr.bf16.mxu0 0
        %1995 = vmatpush1.bf16.msra.mxu0 0
        %1996 = vmatprep.subr.bf16.mxu0 0
        %1997 = vmatpush1.bf16.msra.mxu0 0
        %1998 = vmatprep.subr.bf16.mxu0 0
        %1999 = vmatpush1.bf16.msra.mxu0 0
        %2000 = vmatprep.subr.bf16.mxu0 0
        %2001 = vmatpush1.bf16.msra.mxu0 0
        %2002 = vmatprep.subr.bf16.mxu0 0
        %2003 = vmatpush1.bf16.msra.mxu0 0
        %2004 = vmatprep.subr.bf16.mxu0 0
        %2005 = vmatpush1.bf16.msra.mxu0 0
        %2006 = vmatprep.subr.bf16.mxu0 0
        %2007 = vmatpush1.bf16.msra.mxu0 0
        %2008 = vmatprep.subr.bf16.mxu0 0
        %2009 = vmatpush1.bf16.msra.mxu0 0
        %2010 = vmatprep.mubr.bf16.mxu0 0
        %2011 = vmatmul.mubr.bf16.gmra.mrb[0].mxu0 %v1967
        %v2012 = vpop.f32.mrb[0].mxu0
        %v2013 = vadd.f32 %v1938, %v2012
        %v2014 = vpop.f32.mrb[0].mxu0
        %v2015 = vpop.f32.mrb[0].mxu0
        %v2016 = vadd.f32 %v1938, %v2015
        %v2017 = vpop.f32.mrb[0].mxu0
        %2018 = vmatprep.mubr.bf16.mxu0 0
        %2019 = vmatmul.mubr.bf16.gmra.mrb[0].mxu0 %v1970
        %v2020 = vpop.f32.mrb[0].mxu0
        %v2021 = vadd.f32 %v1938, %v2020
        %v2022 = vpop.f32.mrb[0].mxu0
        %v2023 = vpop.f32.mrb[0].mxu0
        %v2024 = vadd.f32 %v1938, %v2023
        %v2025 = vpop.f32.mrb[0].mxu0
        %2026 = vmatprep.mubr.bf16.mxu0 0
        %2027 = vmatmul.mubr.bf16.gmra.mrb[0].mxu0 %v1973
        %v2028 = vpop.f32.mrb[0].mxu0
        %v2029 = vadd.f32 %v1938, %v2028
        %v2030 = vpop.f32.mrb[0].mxu0
        %v2031 = vpop.f32.mrb[0].mxu0
        %v2032 = vadd.f32 %v1938, %v2031
        %v2033 = vpop.f32.mrb[0].mxu0
        %2034 = vmatprep.mubr.bf16.mxu0 0
        %2035 = vmatmul.mubr.bf16.gmra.mrb[0].mxu0 %v1976
        %v2036 = vpop.f32.mrb[0].mxu0
        %v2037 = vadd.f32 %v1938, %v2036
        %v2038 = vpop.f32.mrb[0].mxu0
        %v2039 = vpop.f32.mrb[0].mxu0
        %v2040 = vadd.f32 %v1938, %v2039
        %v2041 = vpop.f32.mrb[0].mxu0
        %2042 = vdwg.mxu0
        %v2043 = vld [vmem:[%s5] sm:$0xf]
        %v2044 = vld [vmem:[%s6] sm:$0x1]
        %v2046 = vlaneseq
        %v2047 = vshrl.u32 %v2046, 7
        %v2048 = vsub.s32 0, %v2047
        %v2049 = vrot.slane %v2044, %v2048
        %v2052 = vsel %vm370, %v1919, 0
        %v2055 = vsel %vm370, %v1920, 0
        %v2058 = vsel %vm370, %v1921, 0
        %v2061 = vsel %vm370, %v1922, 0
        %v2064 = vsel %vm1033, %v2043, 0
        %2066 = vmatprep.subr.bf16.mxu0 0
        %2067 = vmatpush1.bf16.msra.mxu0 %v2064
        %2068 = vmatprep.subr.bf16.mxu0 0
        %2069 = vmatpush1.bf16.msra.mxu0 0
        %2070 = vmatprep.subr.bf16.mxu0 0
        %2071 = vmatpush1.bf16.msra.mxu0 0
        %2072 = vmatprep.subr.bf16.mxu0 0
        %2073 = vmatpush1.bf16.msra.mxu0 0
        %2074 = vmatprep.subr.bf16.mxu0 0
        %2075 = vmatpush1.bf16.msra.mxu0 0
        %2076 = vmatprep.subr.bf16.mxu0 0
        %2077 = vmatpush1.bf16.msra.mxu0 0
        %2078 = vmatprep.subr.bf16.mxu0 0
        %2079 = vmatpush1.bf16.msra.mxu0 0
        %2080 = vmatprep.subr.bf16.mxu0 0
        %2081 = vmatpush1.bf16.msra.mxu0 0
        %2082 = vmatprep.subr.bf16.mxu0 0
        %2083 = vmatpush1.bf16.msra.mxu0 0
        %2084 = vmatprep.subr.bf16.mxu0 0
        %2085 = vmatpush1.bf16.msra.mxu0 0
        %2086 = vmatprep.subr.bf16.mxu0 0
        %2087 = vmatpush1.bf16.msra.mxu0 0
        %2088 = vmatprep.subr.bf16.mxu0 0
        %2089 = vmatpush1.bf16.msra.mxu0 0
        %2090 = vmatprep.subr.bf16.mxu0 0
        %2091 = vmatpush1.bf16.msra.mxu0 0
        %2092 = vmatprep.subr.bf16.mxu0 0
        %2093 = vmatpush1.bf16.msra.mxu0 0
        %2094 = vmatprep.subr.bf16.mxu0 0
        %2095 = vmatpush1.bf16.msra.mxu0 0
        %2096 = vmatprep.subr.bf16.mxu0 0
        %2097 = vmatpush1.bf16.msra.mxu0 0
        %2098 = vmatprep.mubr.bf16.mxu0 0
        %2099 = vmatmul.mubr.bf16.gmra.mrb[0].mxu0 %v2052
        %v2100 = vpop.f32.mrb[0].mxu0
        %v2101 = vadd.f32 %v2049, %v2100
        %v2102 = vpop.f32.mrb[0].mxu0
        %v2103 = vpop.f32.mrb[0].mxu0
        %v2104 = vadd.f32 %v2049, %v2103
        %v2105 = vpop.f32.mrb[0].mxu0
        %2106 = vmatprep.mubr.bf16.mxu0 0
        %2107 = vmatmul.mubr.bf16.gmra.mrb[0].mxu0 %v2055
        %v2108 = vpop.f32.mrb[0].mxu0
        %v2109 = vadd.f32 %v2049, %v2108
        %v2110 = vpop.f32.mrb[0].mxu0
        %v2111 = vpop.f32.mrb[0].mxu0
        %v2112 = vadd.f32 %v2049, %v2111
        %v2113 = vpop.f32.mrb[0].mxu0
        %2114 = vmatprep.mubr.bf16.mxu0 0
        %2115 = vmatmul.mubr.bf16.gmra.mrb[0].mxu0 %v2058
        %v2116 = vpop.f32.mrb[0].mxu0
        %v2117 = vadd.f32 %v2049, %v2116
        %v2118 = vpop.f32.mrb[0].mxu0
        %v2119 = vpop.f32.mrb[0].mxu0
        %v2120 = vadd.f32 %v2049, %v2119
        %v2121 = vpop.f32.mrb[0].mxu0
        %2122 = vmatprep.mubr.bf16.mxu0 0
        %2123 = vmatmul.mubr.bf16.gmra.mrb[0].mxu0 %v2061
        %v2124 = vpop.f32.mrb[0].mxu0
        %v2125 = vadd.f32 %v2049, %v2124
        %v2126 = vpop.f32.mrb[0].mxu0
        %v2127 = vpop.f32.mrb[0].mxu0
        %v2128 = vadd.f32 %v2049, %v2127
        %v2129 = vpop.f32.mrb[0].mxu0
        %2130 = vdwg.mxu0
        %v2131 = vadd.f32 %v2101, %v2013
        %v2132 = vadd.f32 %v2104, %v2016
        %v2133 = vadd.f32 %v2109, %v2021
        %v2134 = vadd.f32 %v2112, %v2024
        %v2135 = vadd.f32 %v2117, %v2029
        %v2136 = vadd.f32 %v2120, %v2032
        %v2137 = vadd.f32 %v2125, %v2037
        %v2138 = vadd.f32 %v2128, %v2040
        %vm2139 = vcmask 261120
        %2140 = vst.msk [vmem:[%s363] sm:$0xff] %vm2139, %v2131
        %2141 = vst.msk [vmem:[%s363 + $0x8] sm:$0xff] %vm2139, %v2132
        %2142 = vst.msk [vmem:[%s363 + $0x10] sm:$0xff] %vm2139, %v2133
        %2143 = vst.msk [vmem:[%s363 + $0x18] sm:$0xff] %vm2139, %v2134
        %2144 = vst.msk [vmem:[%s363 + $0x20] sm:$0xff] %vm2139, %v2135
        %2145 = vst.msk [vmem:[%s363 + $0x28] sm:$0xff] %vm2139, %v2136
        %2146 = vst.msk [vmem:[%s363 + $0x30] sm:$0xff] %vm2139, %v2137
        %2147 = vst.msk [vmem:[%s363 + $0x38] sm:$0xff] %vm2139, %v2138
        %v2148 = vmax.f32 %v2131, 0.0
        %v2149 = vmax.f32 %v2132, 0.0
        %v2150 = vmax.f32 %v2133, 0.0
        %v2151 = vmax.f32 %v2134, 0.0
        %v2152 = vmax.f32 %v2135, 0.0
        %v2153 = vmax.f32 %v2136, 0.0
        %v2154 = vmax.f32 %v2137, 0.0
        %v2155 = vmax.f32 %v2138, 0.0
        %2156 = vst.msk [vmem:[%s356] sm:$0xff] %vm2139, %v2148
        %2157 = vst.msk [vmem:[%s356 + $0x8] sm:$0xff] %vm2139, %v2149
        %2158 = vst.msk [vmem:[%s356 + $0x10] sm:$0xff] %vm2139, %v2150
        %2159 = vst.msk [vmem:[%s356 + $0x18] sm:$0xff] %vm2139, %v2151
        %2160 = vst.msk [vmem:[%s356 + $0x20] sm:$0xff] %vm2139, %v2152
        %2161 = vst.msk [vmem:[%s356 + $0x28] sm:$0xff] %vm2139, %v2153
        %2162 = vst.msk [vmem:[%s356 + $0x30] sm:$0xff] %vm2139, %v2154
        %2163 = vst.msk [vmem:[%s356 + $0x38] sm:$0xff] %vm2139, %v2155
        %s2164 = sand.u32 %s230, 1
        %s2165 = scalar_lea.sflag [#allocation7], %s2164
        %s2166 = sand.u32 %s230, 1
        %s2167 = smul.addr %s2166, 64
        %s2168 = scalar_lea.vmem [#allocation6], %s2167
        %s2169 = sand.u32 %s256, 1
        %s2170 = scalar_lea.sflag [#allocation9], %s2169
        %s2171 = sand.u32 %s256, 1
        %s2172 = smul.addr %s2171, 64
        %s2173 = scalar_lea.vmem [#allocation8], %s2172
        // Predicated region
        $region57: #{bottleneck_forward.1} parent=55 // pred_check
          %p2174 = pneg %p240
        $region58: #{bottleneck_forward.1} parent=55 // pred_check_branch
          %2176 = sbr.rel (%p2174) target = $region60
        $region59: #{bottleneck_forward.1} parent=55 // pred_region
          %s2178 = ssub.s32 1024, 1024
          %2179 = vsyncadd %s2165, %s2178
          %s2180 = smul.addr %s28, 8
          %s2181 = smul.addr %s2180, 128
          %s2182 = scalar_lea.hbm %s9, %s2181
          %s2183 = sshll.u32 %s2168, 4
          %s2184 = int_to_ptr.vmem [resolvable:$true] %s2183
          %2189 = dma.vmem_to_hbm [thread:$0]  %s2184, 1024, %s2182, %s2165, 128, 128, 8
        $region60: #{bottleneck_forward.1} parent=55 // pred_fallthru
          _
        // Predicated region
        $region61: #{bottleneck_forward.1} parent=55 // pred_check
          %p2190 = pneg %p266
        $region62: #{bottleneck_forward.1} parent=55 // pred_check_branch
          %2192 = sbr.rel (%p2190) target = $region64
        $region63: #{bottleneck_forward.1} parent=55 // pred_region
          %s2194 = ssub.s32 1024, 1024
          %2195 = vsyncadd %s2170, %s2194
          %s2196 = smul.addr %s28, 8
          %s2197 = smul.addr %s2196, 128
          %s2198 = scalar_lea.hbm %s10, %s2197
          %s2199 = sshll.u32 %s2173, 4
          %s2200 = int_to_ptr.vmem [resolvable:$true] %s2199
          %2205 = dma.vmem_to_hbm [thread:$0]  %s2200, 1024, %s2198, %s2170, 128, 128, 8
        $region64: #{bottleneck_forward.1} parent=55 // pred_fallthru
          _
      $region56: #{bottleneck_forward.1} parent=5 // pred_fallthru
        _
      %p2206 = scmp.le.s32.totalorder 2, %s23
      // Predicated region
      $region65: #{bottleneck_forward.1} parent=5 // pred_check
        %p2207 = pneg %p2206
      $region66: #{bottleneck_forward.1} parent=5 // pred_check_branch
        %2209 = sbr.rel (%p2207) target = $region68
      $region67: #{bottleneck_forward.1} parent=5 // pred_region
        %s2210 = ssub.s32 %s23, 2
        // Predicated region
        $region69: #{bottleneck_forward.1} parent=67 // pred_check
          %p2211 = pneg %p246
        $region70: #{bottleneck_forward.1} parent=67 // pred_check_branch
          %2213 = sbr.rel (%p2211) target = $region72
        $region71: #{bottleneck_forward.1} parent=67 // pred_region
          %s2214 = sand.u32 %s231, 1
          %s2215 = scalar_lea.sflag [#allocation7], %s2214
          %s2216 = sand.u32 %s231, 1
          %s2217 = smul.addr %s2216, 64
          %s2218 = scalar_lea.vmem [#allocation6], %s2217
          %2219 = dma.done %s2215, 1024
        $region72: #{bottleneck_forward.1} parent=67 // pred_fallthru
          _
        // Predicated region
        $region73: #{bottleneck_forward.1} parent=67 // pred_check
          %p2220 = pneg %p272
        $region74: #{bottleneck_forward.1} parent=67 // pred_check_branch
          %2222 = sbr.rel (%p2220) target = $region76
        $region75: #{bottleneck_forward.1} parent=67 // pred_region
          %s2223 = sand.u32 %s257, 1
          %s2224 = scalar_lea.sflag [#allocation9], %s2223
          %s2225 = sand.u32 %s257, 1
          %s2226 = smul.addr %s2225, 64
          %s2227 = scalar_lea.vmem [#allocation8], %s2226
          %2228 = dma.done %s2224, 1024
        $region76: #{bottleneck_forward.1} parent=67 // pred_fallthru
          _
      $region68: #{bottleneck_forward.1} parent=5 // pred_fallthru
        _
    $region6: #{bottleneck_forward.1} parent=1 // loop_footer
      %s27 = sadd.s32 1, %s23
    $region7: #{bottleneck_forward.1} parent=1 // loop_footer_branch
      %22 = sbr.rel target = $region3
    $region8: #{bottleneck_forward.1} parent=1 // loop_exit
      _
    %2229 = vsyncpa [#allocation7], 1
    %s2230 = scalar_lea.sflag [#allocation7], 1
    %2231 = vsyncpa %s2230, 1
    %2232 = vsyncpa [#allocation9], 1
    %s2233 = scalar_lea.sflag [#allocation9], 1
    %2234 = vsyncpa %s2233, 1

</llo_original>
